<compile_context>
chip_gen: v7x
topology: tpu7x:2x2x1
jax: 0.10.0
libtpu: 0.0.40
codegen_flags: <defaults>
</compile_context>

<pallas_src>
import functools

import jax
import jax.numpy as jnp
from jax.experimental import pallas as pl
from jax.experimental.pallas import tpu as pltpu

EPS = 1e-5  # nn.BatchNorm2d default eps


# ----------------------------- Pallas kernels -----------------------------

def _batchnorm(y, g, b):
    """Training-mode BatchNorm over rows (all rows valid): biased variance, eps=1e-5."""
    mean = jnp.mean(y, axis=0, keepdims=True)
    var = jnp.maximum(jnp.mean(y * y, axis=0, keepdims=True) - mean * mean, 0.0)
    return (y - mean) * jax.lax.rsqrt(var + EPS) * g + b


def _block_body(a1_ref, w1_ref, g1_ref, b1_ref, w2_ref, g2_ref, b2_ref,
                shortcut, o_ref, h1pad_ref, *, n, ho, wo):
    cout = o_ref.shape[-1]
    m = n * ho * wo

    # ---- conv1 (im2col GEMM, bf16 operands, f32 accumulate) + bn1 + relu ----
    y1 = jnp.dot(a1_ref[...], w1_ref[...], preferred_element_type=jnp.float32)
    h1 = jnp.maximum(_batchnorm(y1, g1_ref[...], b1_ref[...]), 0.0)        # (m, cout) f32

    # ---- stage h1 into a zero-bordered VMEM scratch for conv2's 3x3 windows ----
    h1pad_ref[...] = jnp.zeros_like(h1pad_ref)
    h1pad_ref[:, 1:ho + 1, 1:wo + 1, :] = h1.reshape(n, ho, wo, cout)

    # ---- conv2 (stride 1) as 9 accumulating matmuls over shifted windows ----
    y2 = jnp.zeros((m, cout), jnp.float32)
    for kh in range(3):
        for kw in range(3):
            win = h1pad_ref[:, kh:kh + ho, kw:kw + wo, :]                   # (n, ho, wo, cout)
            win = win.reshape(m, cout).astype(jnp.bfloat16)
            y2 = y2 + jnp.dot(win, w2_ref[kh * 3 + kw],
                              preferred_element_type=jnp.float32)

    # ---- bn2 + residual add + relu ----
    o_ref[...] = jnp.maximum(_batchnorm(y2, g2_ref[...], b2_ref[...]) + shortcut, 0.0)


def _block_kernel_identity(a1, w1, g1, b1, w2, g2, b2, s, o_ref, h1pad, *, n, ho, wo):
    # stride == 1: shortcut is the input itself (cin == cout) -> elementwise add only.
    _block_body(a1, w1, g1, b1, w2, g2, b2, s[...], o_ref, h1pad, n=n, ho=ho, wo=wo)


def _block_kernel_project(a1, w1, g1, b1, w2, g2, b2, s, wsc, o_ref, h1pad, *, n, ho, wo):
    # stride != 1: fused 1x1-conv projection GEMM for the shortcut.
    sc = jnp.dot(s[...], wsc[...], preferred_element_type=jnp.float32)
    _block_body(a1, w1, g1, b1, w2, g2, b2, sc, o_ref, h1pad, n=n, ho=ho, wo=wo)


# ----------------------------- JAX glue -----------------------------

def _vmem():
    return pl.BlockSpec(memory_space=pltpu.MemorySpace.VMEM)


def _im2col(x_nhwc, k, stride, pad):
    n, h, w, c = x_nhwc.shape
    xp = jnp.pad(x_nhwc, ((0, 0), (pad, pad), (pad, pad), (0, 0)))
    ho = (h + 2 * pad - k) // stride + 1
    wo = (w + 2 * pad - k) // stride + 1
    patches = [xp[:, kh:kh + stride * ho:stride, kw:kw + stride * wo:stride, :]
               for kh in range(k) for kw in range(k)]
    a = jnp.concatenate(patches, axis=-1)                # (N, Ho, Wo, k*k*C)
    return a.reshape(n * ho * wo, k * k * c), ho, wo


def init_params(key, cin, cout):
    k1, k2, k3, k4, k5, k6, k7 = jax.random.split(key, 7)
    # conv weights stored in im2col layout (kh*kw*cin, cout), equivalent to PyTorch
    # weight (cout, cin, kh, kw).transpose(2, 3, 1, 0).reshape(9*cin, cout)
    return dict(
        w1=0.1 * jax.random.normal(k1, (9 * cin, cout), jnp.float32),
        w2=0.1 * jax.random.normal(k2, (9 * cout, cout), jnp.float32),
        wsc=0.1 * jax.random.normal(k3, (cin, cout), jnp.float32),   # conv1x1 weight
        g1=1.0 + 0.1 * jax.random.normal(k4, (cout,), jnp.float32),
        b1=0.1 * jax.random.normal(k5, (cout,), jnp.float32),
        g2=1.0 + 0.1 * jax.random.normal(k6, (cout,), jnp.float32),
        b2=0.1 * jax.random.normal(k7, (cout,), jnp.float32),
    )


def block_forward(params, x_nchw, stride):
    n, cin, h, w = x_nchw.shape
    cout = params["w1"].shape[-1]
    xh = jnp.transpose(x_nchw, (0, 2, 3, 1)).astype(jnp.float32)   # NHWC

    # im2col only for conv1 (9*cin wide -- the small one); conv2's windows are built
    # inside the kernel from the VMEM-resident h1 scratch.
    a1, ho, wo = _im2col(xh, 3, stride, 1)
    m = n * ho * wo

    a1_bf = a1.astype(jnp.bfloat16)
    w1_bf = params["w1"].astype(jnp.bfloat16)
    w2_bf = params["w2"].reshape(9, cout, cout).astype(jnp.bfloat16)
    g1, b1 = params["g1"][None, :], params["b1"][None, :]
    g2, b2 = params["g2"][None, :], params["b2"][None, :]

    flops = 2 * m * (9 * cin) * cout + 9 * 2 * m * cout * cout
    bytes_accessed = ((a1_bf.size + w1_bf.size + w2_bf.size) * 2
                      + (g1.size + b1.size + g2.size + b2.size) * 4
                      + m * cout * 4)

    if stride != 1:
        sh = xh[:, ::stride, ::stride, :].reshape(m, cin).astype(jnp.bfloat16)
        wsc = params["wsc"].astype(jnp.bfloat16)
        kernel = functools.partial(_block_kernel_project, n=n, ho=ho, wo=wo)
        operands = (a1_bf, w1_bf, g1, b1, w2_bf, g2, b2, sh, wsc)
        flops += 2 * m * cin * cout
        bytes_accessed += (sh.size + wsc.size) * 2
    else:
        assert cin == cout, "stride==1 identity shortcut requires in_channels == out_channels"
        s = xh.reshape(m, cin)                      # f32, added elementwise in-kernel
        kernel = functools.partial(_block_kernel_identity, n=n, ho=ho, wo=wo)
        operands = (a1_bf, w1_bf, g1, b1, w2_bf, g2, b2, s)
        bytes_accessed += s.size * 4

    out = pl.pallas_call(
        kernel,
        out_shape=jax.ShapeDtypeStruct((m, cout), jnp.float32),
        in_specs=[_vmem()] * len(operands),
        out_specs=_vmem(),
        scratch_shapes=[pltpu.VMEM((n, ho + 2, wo + 2, cout), jnp.float32)],
        compiler_params=pltpu.CompilerParams(vmem_limit_bytes=32 * 1024 * 1024),
        cost_estimate=pl.CostEstimate(flops=flops, transcendentals=2 * cout,
                                      bytes_accessed=bytes_accessed),
    )(*operands)

    out = out.reshape(n, ho, wo, cout)
    # TODO(synk): BatchNorm running_mean/running_var in-place buffer updates are not
    # modeled (they do not affect the training-mode forward output).
    return jnp.transpose(out, (0, 3, 1, 2))   # back to NCHW


# ----------------------------- pure-JAX reference -----------------------------

def _block_ref(params, x_nchw, stride):
    xh = jnp.transpose(x_nchw, (0, 2, 3, 1)).astype(jnp.float32)
    cin, cout = xh.shape[-1], params["w1"].shape[-1]
    w1 = params["w1"].reshape(3, 3, cin, cout)
    w2 = params["w2"].reshape(3, 3, cout, cout)

    def conv(x, wgt, s, pad):
        return jax.lax.conv_general_dilated(
            x, wgt, (s, s), ((pad, pad), (pad, pad)),
            dimension_numbers=("NHWC", "HWIO", "NHWC"))

    def bn(y, g, b):
        mean = jnp.mean(y, axis=(0, 1, 2))
        var = jnp.var(y, axis=(0, 1, 2))
        return (y - mean) * jax.lax.rsqrt(var + EPS) * g + b

    h1 = jax.nn.relu(bn(conv(xh, w1, stride, 1), params["g1"], params["b1"]))
    y2 = bn(conv(h1, w2, 1, 1), params["g2"], params["b2"])
    sc = conv(xh, params["wsc"].reshape(1, 1, cin, cout), stride, 0) if stride != 1 else xh
    return jnp.transpose(jax.nn.relu(y2 + sc), (0, 3, 1, 2))


if __name__ == "__main__":
    key = jax.random.PRNGKey(0)
    kx, kp, kx2, kp2 = jax.random.split(key, 4)

    # Downsampling block (stride=2, projected 1x1 shortcut).
    in_c, out_c, stride = 4, 8, 2
    x = jax.random.normal(kx, (2, in_c, 16, 16), jnp.float32)   # NCHW like PyTorch
    params = init_params(kp, in_c, out_c)
    out = jax.block_until_ready(block_forward(params, x, stride))
    assert out.shape == (2, out_c, 8, 8)
    assert bool(jnp.all(jnp.isfinite(out)))
    ref = _block_ref(params, x, stride)
    assert float(jnp.max(jnp.abs(out - ref))) < 0.25, float(jnp.max(jnp.abs(out - ref)))

    # Identity-shortcut block (stride=1, cin == cout): exercises the no-GEMM shortcut path.
    x2 = jax.random.normal(kx2, (2, 8, 16, 16), jnp.float32)
    params2 = init_params(kp2, 8, 8)
    out2 = jax.block_until_ready(block_forward(params2, x2, 1))
    assert out2.shape == (2, 8, 16, 16)
    assert bool(jnp.all(jnp.isfinite(out2)))
    ref2 = _block_ref(params2, x2, 1)
    assert float(jnp.max(jnp.abs(out2 - ref2))) < 0.25, float(jnp.max(jnp.abs(out2 - ref2)))

    print("KERNEL_OK")
</pallas_src>

<mosaic_0001>
module attributes {stable_mosaic.version = 11 : i64} {
  func.func @_block_kernel_project(%arg0: memref<128x36xbf16, #tpu.memory_space<vmem>>, %arg1: memref<36x8xbf16, #tpu.memory_space<vmem>>, %arg2: memref<1x8xf32, #tpu.memory_space<vmem>>, %arg3: memref<1x8xf32, #tpu.memory_space<vmem>>, %arg4: memref<9x8x8xbf16, #tpu.memory_space<vmem>>, %arg5: memref<1x8xf32, #tpu.memory_space<vmem>>, %arg6: memref<1x8xf32, #tpu.memory_space<vmem>>, %arg7: memref<128x4xbf16, #tpu.memory_space<vmem>>, %arg8: memref<4x8xbf16, #tpu.memory_space<vmem>>, %arg9: memref<128x8xf32, #tpu.memory_space<vmem>>, %arg10: memref<2x10x10x8xf32, #tpu.memory_space<vmem>>) attributes {dimension_semantics = [], scalar_prefetch = 0 : i64, scratch_operands = 1 : i64, tpu.core_type = #tpu.core_type<tc>} {
    %c0 = arith.constant 0 : index
    %c0_0 = arith.constant 0 : index
    %0 = vector.load %arg7[%c0, %c0_0] : memref<128x4xbf16, #tpu.memory_space<vmem>>, vector<128x4xbf16>
    %c0_1 = arith.constant 0 : index
    %c0_2 = arith.constant 0 : index
    %1 = vector.load %arg8[%c0_1, %c0_2] : memref<4x8xbf16, #tpu.memory_space<vmem>>, vector<4x8xbf16>
    %cst = arith.constant dense<0.000000e+00> : vector<128x8xf32>
    %2 = tpu.matmul %0, %1, %cst {dimension_numbers = #tpu.dot_dimension_numbers<[1], [0], [0], [1], [0, 0, 1, 1], [], []>} : vector<128x4xbf16>, vector<4x8xbf16>, vector<128x8xf32> -> vector<128x8xf32>
    %c0_3 = arith.constant 0 : index
    %c0_4 = arith.constant 0 : index
    %3 = vector.load %arg0[%c0_3, %c0_4] : memref<128x36xbf16, #tpu.memory_space<vmem>>, vector<128x36xbf16>
    %c0_5 = arith.constant 0 : index
    %c0_6 = arith.constant 0 : index
    %4 = vector.load %arg1[%c0_5, %c0_6] : memref<36x8xbf16, #tpu.memory_space<vmem>>, vector<36x8xbf16>
    %cst_7 = arith.constant dense<0.000000e+00> : vector<128x8xf32>
    %5 = tpu.matmul %3, %4, %cst_7 {dimension_numbers = #tpu.dot_dimension_numbers<[1], [0], [0], [1], [0, 0, 1, 1], [], []>} : vector<128x36xbf16>, vector<36x8xbf16>, vector<128x8xf32> -> vector<128x8xf32>
    %c0_8 = arith.constant 0 : index
    %c0_9 = arith.constant 0 : index
    %6 = vector.load %arg2[%c0_8, %c0_9] : memref<1x8xf32, #tpu.memory_space<vmem>>, vector<1x8xf32>
    %c0_10 = arith.constant 0 : index
    %c0_11 = arith.constant 0 : index
    %7 = vector.load %arg3[%c0_10, %c0_11] : memref<1x8xf32, #tpu.memory_space<vmem>>, vector<1x8xf32>
    %cst_12 = arith.constant dense<0.000000e+00> : vector<8xf32>
    %8 = vector.multi_reduction <add>, %5, %cst_12 [0] : vector<128x8xf32> to vector<8xf32>
    %9 = vector.shape_cast %8 : vector<8xf32> to vector<1x8xf32>
    %cst_13 = arith.constant 1.280000e+02 : f32
    %10 = vector.broadcast %cst_13 : f32 to vector<1x8xf32>
    %11 = arith.divf %9, %10 : vector<1x8xf32>
    %12 = arith.mulf %5, %5 : vector<128x8xf32>
    %cst_14 = arith.constant dense<0.000000e+00> : vector<8xf32>
    %13 = vector.multi_reduction <add>, %12, %cst_14 [0] : vector<128x8xf32> to vector<8xf32>
    %14 = vector.shape_cast %13 : vector<8xf32> to vector<1x8xf32>
    %cst_15 = arith.constant 1.280000e+02 : f32
    %15 = vector.broadcast %cst_15 : f32 to vector<1x8xf32>
    %16 = arith.divf %14, %15 : vector<1x8xf32>
    %17 = arith.mulf %11, %11 : vector<1x8xf32>
    %18 = arith.subf %16, %17 : vector<1x8xf32>
    %cst_16 = arith.constant 0.000000e+00 : f32
    %19 = vector.broadcast %cst_16 : f32 to vector<1x8xf32>
    %20 = arith.maximumf %18, %19 : vector<1x8xf32>
    %21 = vector.broadcast %11 : vector<1x8xf32> to vector<128x8xf32>
    %22 = arith.subf %5, %21 : vector<128x8xf32>
    %cst_17 = arith.constant 9.99999974E-6 : f32
    %23 = vector.broadcast %cst_17 : f32 to vector<1x8xf32>
    %24 = arith.addf %20, %23 : vector<1x8xf32>
    %25 = math.rsqrt %24 : vector<1x8xf32>
    %26 = vector.broadcast %25 : vector<1x8xf32> to vector<128x8xf32>
    %27 = arith.mulf %22, %26 : vector<128x8xf32>
    %28 = vector.broadcast %6 : vector<1x8xf32> to vector<128x8xf32>
    %29 = arith.mulf %27, %28 : vector<128x8xf32>
    %30 = vector.broadcast %7 : vector<1x8xf32> to vector<128x8xf32>
    %31 = arith.addf %29, %30 : vector<128x8xf32>
    %cst_18 = arith.constant 0.000000e+00 : f32
    %32 = vector.broadcast %cst_18 : f32 to vector<128x8xf32>
    %33 = arith.maximumf %31, %32 : vector<128x8xf32>
    %cst_19 = arith.constant 0.000000e+00 : f32
    %34 = vector.broadcast %cst_19 : f32 to vector<2x10x10x8xf32>
    %c0_20 = arith.constant 0 : index
    %c0_21 = arith.constant 0 : index
    %c0_22 = arith.constant 0 : index
    %c0_23 = arith.constant 0 : index
    %35 = vector.load %arg10[%c0_20, %c0_21, %c0_22, %c0_23] : memref<2x10x10x8xf32, #tpu.memory_space<vmem>>, vector<2x10x10x8xf32>
    tpu.vector_store %arg10[%c0_20, %c0_21, %c0_22, %c0_23], %34 {strides = array<i32>} : memref<2x10x10x8xf32, #tpu.memory_space<vmem>>, vector<2x10x10x8xf32>,
    %36 = vector.shape_cast %33 : vector<128x8xf32> to vector<2x8x8x8xf32>
    %c0_24 = arith.constant 0 : index
    %c1 = arith.constant 1 : index
    %c1_25 = arith.constant 1 : index
    %c0_26 = arith.constant 0 : index
    %37 = vector.load %arg10[%c0_24, %c1, %c1_25, %c0_26] : memref<2x10x10x8xf32, #tpu.memory_space<vmem>>, vector<2x8x8x8xf32>
    tpu.vector_store %arg10[%c0_24, %c1, %c1_25, %c0_26], %36 {strides = array<i32>} : memref<2x10x10x8xf32, #tpu.memory_space<vmem>>, vector<2x8x8x8xf32>,
    %cst_27 = arith.constant 0.000000e+00 : f32
    %38 = vector.broadcast %cst_27 : f32 to vector<128x8xf32>
    %c0_28 = arith.constant 0 : index
    %c0_29 = arith.constant 0 : index
    %c0_30 = arith.constant 0 : index
    %c0_31 = arith.constant 0 : index
    %39 = vector.load %arg10[%c0_28, %c0_29, %c0_30, %c0_31] : memref<2x10x10x8xf32, #tpu.memory_space<vmem>>, vector<2x8x8x8xf32>
    %40 = vector.shape_cast %39 : vector<2x8x8x8xf32> to vector<128x8xf32>
    %41 = arith.truncf %40 : vector<128x8xf32> to vector<128x8xbf16>
    %c0_32 = arith.constant 0 : index
    %c0_33 = arith.constant 0 : index
    %c0_34 = arith.constant 0 : index
    %42 = vector.load %arg4[%c0_32, %c0_33, %c0_34] : memref<9x8x8xbf16, #tpu.memory_space<vmem>>, vector<1x8x8xbf16>
    %43 = vector.shape_cast %42 : vector<1x8x8xbf16> to vector<8x8xbf16>
    %cst_35 = arith.constant dense<0.000000e+00> : vector<128x8xf32>
    %44 = tpu.matmul %41, %43, %cst_35 {dimension_numbers = #tpu.dot_dimension_numbers<[1], [0], [0], [1], [0, 0, 1, 1], [], []>} : vector<128x8xbf16>, vector<8x8xbf16>, vector<128x8xf32> -> vector<128x8xf32>
    %45 = arith.addf %38, %44 : vector<128x8xf32>
    %c0_36 = arith.constant 0 : index
    %c0_37 = arith.constant 0 : index
    %c1_38 = arith.constant 1 : index
    %c0_39 = arith.constant 0 : index
    %46 = vector.load %arg10[%c0_36, %c0_37, %c1_38, %c0_39] : memref<2x10x10x8xf32, #tpu.memory_space<vmem>>, vector<2x8x8x8xf32>
    %47 = vector.shape_cast %46 : vector<2x8x8x8xf32> to vector<128x8xf32>
    %48 = arith.truncf %47 : vector<128x8xf32> to vector<128x8xbf16>
    %c1_40 = arith.constant 1 : index
    %c0_41 = arith.constant 0 : index
    %c0_42 = arith.constant 0 : index
    %49 = vector.load %arg4[%c1_40, %c0_41, %c0_42] : memref<9x8x8xbf16, #tpu.memory_space<vmem>>, vector<1x8x8xbf16>
    %50 = vector.shape_cast %49 : vector<1x8x8xbf16> to vector<8x8xbf16>
    %cst_43 = arith.constant dense<0.000000e+00> : vector<128x8xf32>
    %51 = tpu.matmul %48, %50, %cst_43 {dimension_numbers = #tpu.dot_dimension_numbers<[1], [0], [0], [1], [0, 0, 1, 1], [], []>} : vector<128x8xbf16>, vector<8x8xbf16>, vector<128x8xf32> -> vector<128x8xf32>
    %52 = arith.addf %45, %51 : vector<128x8xf32>
    %c0_44 = arith.constant 0 : index
    %c0_45 = arith.constant 0 : index
    %c2 = arith.constant 2 : index
    %c0_46 = arith.constant 0 : index
    %53 = vector.load %arg10[%c0_44, %c0_45, %c2, %c0_46] : memref<2x10x10x8xf32, #tpu.memory_space<vmem>>, vector<2x8x8x8xf32>
    %54 = vector.shape_cast %53 : vector<2x8x8x8xf32> to vector<128x8xf32>
    %55 = arith.truncf %54 : vector<128x8xf32> to vector<128x8xbf16>
    %c2_47 = arith.constant 2 : index
    %c0_48 = arith.constant 0 : index
    %c0_49 = arith.constant 0 : index
    %56 = vector.load %arg4[%c2_47, %c0_48, %c0_49] : memref<9x8x8xbf16, #tpu.memory_space<vmem>>, vector<1x8x8xbf16>
    %57 = vector.shape_cast %56 : vector<1x8x8xbf16> to vector<8x8xbf16>
    %cst_50 = arith.constant dense<0.000000e+00> : vector<128x8xf32>
    %58 = tpu.matmul %55, %57, %cst_50 {dimension_numbers = #tpu.dot_dimension_numbers<[1], [0], [0], [1], [0, 0, 1, 1], [], []>} : vector<128x8xbf16>, vector<8x8xbf16>, vector<128x8xf32> -> vector<128x8xf32>
    %59 = arith.addf %52, %58 : vector<128x8xf32>
    %c0_51 = arith.constant 0 : index
    %c1_52 = arith.constant 1 : index
    %c0_53 = arith.constant 0 : index
    %c0_54 = arith.constant 0 : index
    %60 = vector.load %arg10[%c0_51, %c1_52, %c0_53, %c0_54] : memref<2x10x10x8xf32, #tpu.memory_space<vmem>>, vector<2x8x8x8xf32>
    %61 = vector.shape_cast %60 : vector<2x8x8x8xf32> to vector<128x8xf32>
    %62 = arith.truncf %61 : vector<128x8xf32> to vector<128x8xbf16>
    %c3 = arith.constant 3 : index
    %c0_55 = arith.constant 0 : index
    %c0_56 = arith.constant 0 : index
    %63 = vector.load %arg4[%c3, %c0_55, %c0_56] : memref<9x8x8xbf16, #tpu.memory_space<vmem>>, vector<1x8x8xbf16>
    %64 = vector.shape_cast %63 : vector<1x8x8xbf16> to vector<8x8xbf16>
    %cst_57 = arith.constant dense<0.000000e+00> : vector<128x8xf32>
    %65 = tpu.matmul %62, %64, %cst_57 {dimension_numbers = #tpu.dot_dimension_numbers<[1], [0], [0], [1], [0, 0, 1, 1], [], []>} : vector<128x8xbf16>, vector<8x8xbf16>, vector<128x8xf32> -> vector<128x8xf32>
    %66 = arith.addf %59, %65 : vector<128x8xf32>
    %c0_58 = arith.constant 0 : index
    %c1_59 = arith.constant 1 : index
    %c1_60 = arith.constant 1 : index
    %c0_61 = arith.constant 0 : index
    %67 = vector.load %arg10[%c0_58, %c1_59, %c1_60, %c0_61] : memref<2x10x10x8xf32, #tpu.memory_space<vmem>>, vector<2x8x8x8xf32>
    %68 = vector.shape_cast %67 : vector<2x8x8x8xf32> to vector<128x8xf32>
    %69 = arith.truncf %68 : vector<128x8xf32> to vector<128x8xbf16>
    %c4 = arith.constant 4 : index
    %c0_62 = arith.constant 0 : index
    %c0_63 = arith.constant 0 : index
    %70 = vector.load %arg4[%c4, %c0_62, %c0_63] : memref<9x8x8xbf16, #tpu.memory_space<vmem>>, vector<1x8x8xbf16>
    %71 = vector.shape_cast %70 : vector<1x8x8xbf16> to vector<8x8xbf16>
    %cst_64 = arith.constant dense<0.000000e+00> : vector<128x8xf32>
    %72 = tpu.matmul %69, %71, %cst_64 {dimension_numbers = #tpu.dot_dimension_numbers<[1], [0], [0], [1], [0, 0, 1, 1], [], []>} : vector<128x8xbf16>, vector<8x8xbf16>, vector<128x8xf32> -> vector<128x8xf32>
    %73 = arith.addf %66, %72 : vector<128x8xf32>
    %c0_65 = arith.constant 0 : index
    %c1_66 = arith.constant 1 : index
    %c2_67 = arith.constant 2 : index
    %c0_68 = arith.constant 0 : index
    %74 = vector.load %arg10[%c0_65, %c1_66, %c2_67, %c0_68] : memref<2x10x10x8xf32, #tpu.memory_space<vmem>>, vector<2x8x8x8xf32>
    %75 = vector.shape_cast %74 : vector<2x8x8x8xf32> to vector<128x8xf32>
    %76 = arith.truncf %75 : vector<128x8xf32> to vector<128x8xbf16>
    %c5 = arith.constant 5 : index
    %c0_69 = arith.constant 0 : index
    %c0_70 = arith.constant 0 : index
    %77 = vector.load %arg4[%c5, %c0_69, %c0_70] : memref<9x8x8xbf16, #tpu.memory_space<vmem>>, vector<1x8x8xbf16>
    %78 = vector.shape_cast %77 : vector<1x8x8xbf16> to vector<8x8xbf16>
    %cst_71 = arith.constant dense<0.000000e+00> : vector<128x8xf32>
    %79 = tpu.matmul %76, %78, %cst_71 {dimension_numbers = #tpu.dot_dimension_numbers<[1], [0], [0], [1], [0, 0, 1, 1], [], []>} : vector<128x8xbf16>, vector<8x8xbf16>, vector<128x8xf32> -> vector<128x8xf32>
    %80 = arith.addf %73, %79 : vector<128x8xf32>
    %c0_72 = arith.constant 0 : index
    %c2_73 = arith.constant 2 : index
    %c0_74 = arith.constant 0 : index
    %c0_75 = arith.constant 0 : index
    %81 = vector.load %arg10[%c0_72, %c2_73, %c0_74, %c0_75] : memref<2x10x10x8xf32, #tpu.memory_space<vmem>>, vector<2x8x8x8xf32>
    %82 = vector.shape_cast %81 : vector<2x8x8x8xf32> to vector<128x8xf32>
    %83 = arith.truncf %82 : vector<128x8xf32> to vector<128x8xbf16>
    %c6 = arith.constant 6 : index
    %c0_76 = arith.constant 0 : index
    %c0_77 = arith.constant 0 : index
    %84 = vector.load %arg4[%c6, %c0_76, %c0_77] : memref<9x8x8xbf16, #tpu.memory_space<vmem>>, vector<1x8x8xbf16>
    %85 = vector.shape_cast %84 : vector<1x8x8xbf16> to vector<8x8xbf16>
    %cst_78 = arith.constant dense<0.000000e+00> : vector<128x8xf32>
    %86 = tpu.matmul %83, %85, %cst_78 {dimension_numbers = #tpu.dot_dimension_numbers<[1], [0], [0], [1], [0, 0, 1, 1], [], []>} : vector<128x8xbf16>, vector<8x8xbf16>, vector<128x8xf32> -> vector<128x8xf32>
    %87 = arith.addf %80, %86 : vector<128x8xf32>
    %c0_79 = arith.constant 0 : index
    %c2_80 = arith.constant 2 : index
    %c1_81 = arith.constant 1 : index
    %c0_82 = arith.constant 0 : index
    %88 = vector.load %arg10[%c0_79, %c2_80, %c1_81, %c0_82] : memref<2x10x10x8xf32, #tpu.memory_space<vmem>>, vector<2x8x8x8xf32>
    %89 = vector.shape_cast %88 : vector<2x8x8x8xf32> to vector<128x8xf32>
    %90 = arith.truncf %89 : vector<128x8xf32> to vector<128x8xbf16>
    %c7 = arith.constant 7 : index
    %c0_83 = arith.constant 0 : index
    %c0_84 = arith.constant 0 : index
    %91 = vector.load %arg4[%c7, %c0_83, %c0_84] : memref<9x8x8xbf16, #tpu.memory_space<vmem>>, vector<1x8x8xbf16>
    %92 = vector.shape_cast %91 : vector<1x8x8xbf16> to vector<8x8xbf16>
    %cst_85 = arith.constant dense<0.000000e+00> : vector<128x8xf32>
    %93 = tpu.matmul %90, %92, %cst_85 {dimension_numbers = #tpu.dot_dimension_numbers<[1], [0], [0], [1], [0, 0, 1, 1], [], []>} : vector<128x8xbf16>, vector<8x8xbf16>, vector<128x8xf32> -> vector<128x8xf32>
    %94 = arith.addf %87, %93 : vector<128x8xf32>
    %c0_86 = arith.constant 0 : index
    %c2_87 = arith.constant 2 : index
    %c2_88 = arith.constant 2 : index
    %c0_89 = arith.constant 0 : index
    %95 = vector.load %arg10[%c0_86, %c2_87, %c2_88, %c0_89] : memref<2x10x10x8xf32, #tpu.memory_space<vmem>>, vector<2x8x8x8xf32>
    %96 = vector.shape_cast %95 : vector<2x8x8x8xf32> to vector<128x8xf32>
    %97 = arith.truncf %96 : vector<128x8xf32> to vector<128x8xbf16>
    %c8 = arith.constant 8 : index
    %c0_90 = arith.constant 0 : index
    %c0_91 = arith.constant 0 : index
    %98 = vector.load %arg4[%c8, %c0_90, %c0_91] : memref<9x8x8xbf16, #tpu.memory_space<vmem>>, vector<1x8x8xbf16>
    %99 = vector.shape_cast %98 : vector<1x8x8xbf16> to vector<8x8xbf16>
    %cst_92 = arith.constant dense<0.000000e+00> : vector<128x8xf32>
    %100 = tpu.matmul %97, %99, %cst_92 {dimension_numbers = #tpu.dot_dimension_numbers<[1], [0], [0], [1], [0, 0, 1, 1], [], []>} : vector<128x8xbf16>, vector<8x8xbf16>, vector<128x8xf32> -> vector<128x8xf32>
    %101 = arith.addf %94, %100 : vector<128x8xf32>
    %c0_93 = arith.constant 0 : index
    %c0_94 = arith.constant 0 : index
    %102 = vector.load %arg5[%c0_93, %c0_94] : memref<1x8xf32, #tpu.memory_space<vmem>>, vector<1x8xf32>
    %c0_95 = arith.constant 0 : index
    %c0_96 = arith.constant 0 : index
    %103 = vector.load %arg6[%c0_95, %c0_96] : memref<1x8xf32, #tpu.memory_space<vmem>>, vector<1x8xf32>
    %cst_97 = arith.constant dense<0.000000e+00> : vector<8xf32>
    %104 = vector.multi_reduction <add>, %101, %cst_97 [0] : vector<128x8xf32> to vector<8xf32>
    %105 = vector.shape_cast %104 : vector<8xf32> to vector<1x8xf32>
    %cst_98 = arith.constant 1.280000e+02 : f32
    %106 = vector.broadcast %cst_98 : f32 to vector<1x8xf32>
    %107 = arith.divf %105, %106 : vector<1x8xf32>
    %108 = arith.mulf %101, %101 : vector<128x8xf32>
    %cst_99 = arith.constant dense<0.000000e+00> : vector<8xf32>
    %109 = vector.multi_reduction <add>, %108, %cst_99 [0] : vector<128x8xf32> to vector<8xf32>
    %110 = vector.shape_cast %109 : vector<8xf32> to vector<1x8xf32>
    %cst_100 = arith.constant 1.280000e+02 : f32
    %111 = vector.broadcast %cst_100 : f32 to vector<1x8xf32>
    %112 = arith.divf %110, %111 : vector<1x8xf32>
    %113 = arith.mulf %107, %107 : vector<1x8xf32>
    %114 = arith.subf %112, %113 : vector<1x8xf32>
    %cst_101 = arith.constant 0.000000e+00 : f32
    %115 = vector.broadcast %cst_101 : f32 to vector<1x8xf32>
    %116 = arith.maximumf %114, %115 : vector<1x8xf32>
    %117 = vector.broadcast %107 : vector<1x8xf32> to vector<128x8xf32>
    %118 = arith.subf %101, %117 : vector<128x8xf32>
    %cst_102 = arith.constant 9.99999974E-6 : f32
    %119 = vector.broadcast %cst_102 : f32 to vector<1x8xf32>
    %120 = arith.addf %116, %119 : vector<1x8xf32>
    %121 = math.rsqrt %120 : vector<1x8xf32>
    %122 = vector.broadcast %121 : vector<1x8xf32> to vector<128x8xf32>
    %123 = arith.mulf %118, %122 : vector<128x8xf32>
    %124 = vector.broadcast %102 : vector<1x8xf32> to vector<128x8xf32>
    %125 = arith.mulf %123, %124 : vector<128x8xf32>
    %126 = vector.broadcast %103 : vector<1x8xf32> to vector<128x8xf32>
    %127 = arith.addf %125, %126 : vector<128x8xf32>
    %128 = arith.addf %127, %2 : vector<128x8xf32>
    %cst_103 = arith.constant 0.000000e+00 : f32
    %129 = vector.broadcast %cst_103 : f32 to vector<128x8xf32>
    %130 = arith.maximumf %128, %129 : vector<128x8xf32>
    %c0_104 = arith.constant 0 : index
    %c0_105 = arith.constant 0 : index
    %131 = vector.load %arg9[%c0_104, %c0_105] : memref<128x8xf32, #tpu.memory_space<vmem>>, vector<128x8xf32>
    tpu.vector_store %arg9[%c0_104, %c0_105], %130 {strides = array<i32>} : memref<128x8xf32, #tpu.memory_space<vmem>>, vector<128x8xf32>,
    return
  }
}

</mosaic_0001>

<llo_original>
// kernel: tpu_custom_call.1
$region0: #{tpu_custom_call.1}
  #allocation0 [shape = 'u32[]', space=smem, size = 0x4, offset = 0x4, fixed_abs, tag = 'smem constant byte address 0x4 - core index']
  #allocation1 [shape = 'u32[144,128]{1,0:T(1,128)}', space=vmem, size = 0x12000, scoped, tag = 'internal scratch']
  #allocation2 [shape = 'f32[2,10,10,8]{3,2,1,0:T(8,128)}', space=vmem, size = 0x28000, scoped, tag = 'scratch operand']
  %s0 = inlined_call_operand.vmem [shape: bf16[128,36], index: 0, kind: input, shape index: {}]
  %s1 = inlined_call_operand.vmem [shape: bf16[36,8], index: 1, kind: input, shape index: {}]
  %s2 = inlined_call_operand.vmem [shape: f32[1,8], index: 2, kind: input, shape index: {}]
  %s3 = inlined_call_operand.vmem [shape: f32[1,8], index: 3, kind: input, shape index: {}]
  %s4 = inlined_call_operand.vmem [shape: bf16[9,8,8], index: 4, kind: input, shape index: {}]
  %s5 = inlined_call_operand.vmem [shape: f32[1,8], index: 5, kind: input, shape index: {}]
  %s6 = inlined_call_operand.vmem [shape: f32[1,8], index: 6, kind: input, shape index: {}]
  %s7 = inlined_call_operand.vmem [shape: bf16[128,4], index: 7, kind: input, shape index: {}]
  %s8 = inlined_call_operand.vmem [shape: bf16[4,8], index: 8, kind: input, shape index: {}]
  %s9 = inlined_call_operand.vmem [shape: f32[128,8], index: 9, kind: output, shape index: {}]
  %s10 = sld [smem:[#allocation0]]
  $region46: #{tpu_custom_call.1} parent=0
    _
  %s12 = ssub.s32 1, %s10
  %s13 = scalar_select 0, %s12, %s10
  // Predicated region
  $region2: #{tpu_custom_call.1} parent=0 // pred_check
    _
  $region3: #{tpu_custom_call.1} parent=0 // pred_check_branch
    %15 = sbr.rel (0) target = $region5
  $region4: #{tpu_custom_call.1} parent=0 // pred_region
    _
  $region5: #{tpu_custom_call.1} parent=0 // pred_fallthru
    _
  // Predicated region
  $region6: #{tpu_custom_call.1} parent=0 // pred_check
    _
  $region7: #{tpu_custom_call.1} parent=0 // pred_check_branch
    %17 = sbr.rel (0) target = $region9
  $region8: #{tpu_custom_call.1} parent=0 // pred_region
    _
  $region9: #{tpu_custom_call.1} parent=0 // pred_fallthru
    _
  // Predicated region
  $region10: #{tpu_custom_call.1} parent=0 // pred_check
    _
  $region11: #{tpu_custom_call.1} parent=0 // pred_check_branch
    %19 = sbr.rel (0) target = $region13
  $region12: #{tpu_custom_call.1} parent=0 // pred_region
    _
  $region13: #{tpu_custom_call.1} parent=0 // pred_fallthru
    _
  // Predicated region
  $region14: #{tpu_custom_call.1} parent=0 // pred_check
    _
  $region15: #{tpu_custom_call.1} parent=0 // pred_check_branch
    %21 = sbr.rel (0) target = $region17
  $region16: #{tpu_custom_call.1} parent=0 // pred_region
    _
  $region17: #{tpu_custom_call.1} parent=0 // pred_fallthru
    _
  // Predicated region
  $region18: #{tpu_custom_call.1} parent=0 // pred_check
    _
  $region19: #{tpu_custom_call.1} parent=0 // pred_check_branch
    %23 = sbr.rel (0) target = $region21
  $region20: #{tpu_custom_call.1} parent=0 // pred_region
    _
  $region21: #{tpu_custom_call.1} parent=0 // pred_fallthru
    _
  // Predicated region
  $region22: #{tpu_custom_call.1} parent=0 // pred_check
    _
  $region23: #{tpu_custom_call.1} parent=0 // pred_check_branch
    %25 = sbr.rel (0) target = $region25
  $region24: #{tpu_custom_call.1} parent=0 // pred_region
    _
  $region25: #{tpu_custom_call.1} parent=0 // pred_fallthru
    _
  // Predicated region
  $region26: #{tpu_custom_call.1} parent=0 // pred_check
    _
  $region27: #{tpu_custom_call.1} parent=0 // pred_check_branch
    %27 = sbr.rel (0) target = $region29
  $region28: #{tpu_custom_call.1} parent=0 // pred_region
    _
  $region29: #{tpu_custom_call.1} parent=0 // pred_fallthru
    _
  // Predicated region
  $region30: #{tpu_custom_call.1} parent=0 // pred_check
    _
  $region31: #{tpu_custom_call.1} parent=0 // pred_check_branch
    %29 = sbr.rel (0) target = $region33
  $region32: #{tpu_custom_call.1} parent=0 // pred_region
    _
  $region33: #{tpu_custom_call.1} parent=0 // pred_fallthru
    _
  // Predicated region
  $region34: #{tpu_custom_call.1} parent=0 // pred_check
    _
  $region35: #{tpu_custom_call.1} parent=0 // pred_check_branch
    %31 = sbr.rel (0) target = $region37
  $region36: #{tpu_custom_call.1} parent=0 // pred_region
    _
  $region37: #{tpu_custom_call.1} parent=0 // pred_fallthru
    _
  %v33 = vld [vmem:[%s7] sm:$0xf]
  %v34 = vld [vmem:[%s7 + $0x4] sm:$0xf]
  %v35 = vld [vmem:[%s7 + $0x8] sm:$0xf]
  %v36 = vld [vmem:[%s7 + $0xc] sm:$0xf]
  %v37 = vld [vmem:[%s7 + $0x10] sm:$0xf]
  %v38 = vld [vmem:[%s7 + $0x14] sm:$0xf]
  %v39 = vld [vmem:[%s7 + $0x18] sm:$0xf]
  %v40 = vld [vmem:[%s7 + $0x1c] sm:$0xf]
  %v41 = vld [vmem:[%s7 + $0x20] sm:$0xf]
  %v42 = vld [vmem:[%s7 + $0x24] sm:$0xf]
  %v43 = vld [vmem:[%s7 + $0x28] sm:$0xf]
  %v44 = vld [vmem:[%s7 + $0x2c] sm:$0xf]
  %v45 = vld [vmem:[%s7 + $0x30] sm:$0xf]
  %v46 = vld [vmem:[%s7 + $0x34] sm:$0xf]
  %v47 = vld [vmem:[%s7 + $0x38] sm:$0xf]
  %v48 = vld [vmem:[%s7 + $0x3c] sm:$0xf]
  %v49 = vld [vmem:[%s8] sm:$0x3]
  %v66 = vunpack.c.l.b16 %v33
  %v67 = vunpack.c.l.b16 %v34
  %v68 = vunpack.c.l.b16 %v35
  %v69 = vunpack.c.l.b16 %v36
  %v70 = vunpack.c.l.b16 %v37
  %v71 = vunpack.c.l.b16 %v38
  %v72 = vunpack.c.l.b16 %v39
  %v73 = vunpack.c.l.b16 %v40
  %v74 = vunpack.c.l.b16 %v41
  %v75 = vunpack.c.l.b16 %v42
  %v76 = vunpack.c.l.b16 %v43
  %v77 = vunpack.c.l.b16 %v44
  %v78 = vunpack.c.l.b16 %v45
  %v79 = vunpack.c.l.b16 %v46
  %v80 = vunpack.c.l.b16 %v47
  %v81 = vunpack.c.l.b16 %v48
  %v82 = vpack.c.b16 %v67, %v66
  %v83 = vpack.c.b16 %v69, %v68
  %v84 = vpack.c.b16 %v71, %v70
  %v85 = vpack.c.b16 %v73, %v72
  %v86 = vpack.c.b16 %v75, %v74
  %v87 = vpack.c.b16 %v77, %v76
  %v88 = vpack.c.b16 %v79, %v78
  %v89 = vpack.c.b16 %v81, %v80
  %vm90 = vcmask 31744
  %v92 = vsel %vm90, %v82, 0
  %v95 = vsel %vm90, %v83, 0
  %v98 = vsel %vm90, %v84, 0
  %v101 = vsel %vm90, %v85, 0
  %v104 = vsel %vm90, %v86, 0
  %v107 = vsel %vm90, %v87, 0
  %v110 = vsel %vm90, %v88, 0
  %v113 = vsel %vm90, %v89, 0
  %vm115 = vcmask 1041408
  %v117 = vsel %vm115, %v49, 0
  %119 = vmatprep.subr.bf16.mxu0 0
  %120 = vmatpush1.bf16.msra.mxu0 %v117
  %121 = vmatprep.subr.bf16.mxu0 0
  %122 = vmatpush1.bf16.msra.mxu0 0
  %123 = vmatprep.subr.bf16.mxu0 0
  %124 = vmatpush1.bf16.msra.mxu0 0
  %125 = vmatprep.subr.bf16.mxu0 0
  %126 = vmatpush1.bf16.msra.mxu0 0
  %127 = vmatprep.subr.bf16.mxu0 0
  %128 = vmatpush1.bf16.msra.mxu0 0
  %129 = vmatprep.subr.bf16.mxu0 0
  %130 = vmatpush1.bf16.msra.mxu0 0
  %131 = vmatprep.subr.bf16.mxu0 0
  %132 = vmatpush1.bf16.msra.mxu0 0
  %133 = vmatprep.subr.bf16.mxu0 0
  %134 = vmatpush1.bf16.msra.mxu0 0
  %135 = vmatprep.subr.bf16.mxu0 0
  %136 = vmatpush1.bf16.msra.mxu0 0
  %137 = vmatprep.subr.bf16.mxu0 0
  %138 = vmatpush1.bf16.msra.mxu0 0
  %139 = vmatprep.subr.bf16.mxu0 0
  %140 = vmatpush1.bf16.msra.mxu0 0
  %141 = vmatprep.subr.bf16.mxu0 0
  %142 = vmatpush1.bf16.msra.mxu0 0
  %143 = vmatprep.subr.bf16.mxu0 0
  %144 = vmatpush1.bf16.msra.mxu0 0
  %145 = vmatprep.subr.bf16.mxu0 0
  %146 = vmatpush1.bf16.msra.mxu0 0
  %147 = vmatprep.subr.bf16.mxu0 0
  %148 = vmatpush1.bf16.msra.mxu0 0
  %149 = vmatprep.subr.bf16.mxu0 0
  %150 = vmatpush1.bf16.msra.mxu0 0
  %151 = vmatprep.mubr.bf16.mxu0 0
  %152 = vmatmul.mubr.bf16.gmra.mrb[0].mxu0 %v92
  %v153 = vpop.f32.mrb[0].mxu0
  %v154 = vadd.f32 0.0, %v153
  %v155 = vpop.f32.mrb[0].mxu0
  %v156 = vpop.f32.mrb[0].mxu0
  %v157 = vadd.f32 0.0, %v156
  %v158 = vpop.f32.mrb[0].mxu0
  %159 = vmatprep.mubr.bf16.mxu0 0
  %160 = vmatmul.mubr.bf16.gmra.mrb[0].mxu0 %v95
  %v161 = vpop.f32.mrb[0].mxu0
  %v162 = vadd.f32 0.0, %v161
  %v163 = vpop.f32.mrb[0].mxu0
  %v164 = vpop.f32.mrb[0].mxu0
  %v165 = vadd.f32 0.0, %v164
  %v166 = vpop.f32.mrb[0].mxu0
  %167 = vmatprep.mubr.bf16.mxu0 0
  %168 = vmatmul.mubr.bf16.gmra.mrb[0].mxu0 %v98
  %v169 = vpop.f32.mrb[0].mxu0
  %v170 = vadd.f32 0.0, %v169
  %v171 = vpop.f32.mrb[0].mxu0
  %v172 = vpop.f32.mrb[0].mxu0
  %v173 = vadd.f32 0.0, %v172
  %v174 = vpop.f32.mrb[0].mxu0
  %175 = vmatprep.mubr.bf16.mxu0 0
  %176 = vmatmul.mubr.bf16.gmra.mrb[0].mxu0 %v101
  %v177 = vpop.f32.mrb[0].mxu0
  %v178 = vadd.f32 0.0, %v177
  %v179 = vpop.f32.mrb[0].mxu0
  %v180 = vpop.f32.mrb[0].mxu0
  %v181 = vadd.f32 0.0, %v180
  %v182 = vpop.f32.mrb[0].mxu0
  %183 = vmatprep.mubr.bf16.mxu0 0
  %184 = vmatmul.mubr.bf16.gmra.mrb[0].mxu0 %v104
  %v185 = vpop.f32.mrb[0].mxu0
  %v186 = vadd.f32 0.0, %v185
  %v187 = vpop.f32.mrb[0].mxu0
  %v188 = vpop.f32.mrb[0].mxu0
  %v189 = vadd.f32 0.0, %v188
  %v190 = vpop.f32.mrb[0].mxu0
  %191 = vmatprep.mubr.bf16.mxu0 0
  %192 = vmatmul.mubr.bf16.gmra.mrb[0].mxu0 %v107
  %v193 = vpop.f32.mrb[0].mxu0
  %v194 = vadd.f32 0.0, %v193
  %v195 = vpop.f32.mrb[0].mxu0
  %v196 = vpop.f32.mrb[0].mxu0
  %v197 = vadd.f32 0.0, %v196
  %v198 = vpop.f32.mrb[0].mxu0
  %199 = vmatprep.mubr.bf16.mxu0 0
  %200 = vmatmul.mubr.bf16.gmra.mrb[0].mxu0 %v110
  %v201 = vpop.f32.mrb[0].mxu0
  %v202 = vadd.f32 0.0, %v201
  %v203 = vpop.f32.mrb[0].mxu0
  %v204 = vpop.f32.mrb[0].mxu0
  %v205 = vadd.f32 0.0, %v204
  %v206 = vpop.f32.mrb[0].mxu0
  %207 = vmatprep.mubr.bf16.mxu0 0
  %208 = vmatmul.mubr.bf16.gmra.mrb[0].mxu0 %v113
  %v209 = vpop.f32.mrb[0].mxu0
  %v210 = vadd.f32 0.0, %v209
  %v211 = vpop.f32.mrb[0].mxu0
  %v212 = vpop.f32.mrb[0].mxu0
  %v213 = vadd.f32 0.0, %v212
  %v214 = vpop.f32.mrb[0].mxu0
  %215 = vdwg.mxu0
  %v216 = vld [vmem:[%s0] sm:$0xf]
  %v217 = vld [vmem:[%s0 + $0x4] sm:$0xf]
  %v218 = vld [vmem:[%s0 + $0x8] sm:$0xf]
  %v219 = vld [vmem:[%s0 + $0xc] sm:$0xf]
  %v220 = vld [vmem:[%s0 + $0x10] sm:$0xf]
  %v221 = vld [vmem:[%s0 + $0x14] sm:$0xf]
  %v222 = vld [vmem:[%s0 + $0x18] sm:$0xf]
  %v223 = vld [vmem:[%s0 + $0x1c] sm:$0xf]
  %v224 = vld [vmem:[%s0 + $0x20] sm:$0xf]
  %v225 = vld [vmem:[%s0 + $0x24] sm:$0xf]
  %v226 = vld [vmem:[%s0 + $0x28] sm:$0xf]
  %v227 = vld [vmem:[%s0 + $0x2c] sm:$0xf]
  %v228 = vld [vmem:[%s0 + $0x30] sm:$0xf]
  %v229 = vld [vmem:[%s0 + $0x34] sm:$0xf]
  %v230 = vld [vmem:[%s0 + $0x38] sm:$0xf]
  %v231 = vld [vmem:[%s0 + $0x3c] sm:$0xf]
  %v232 = vld [vmem:[%s1] sm:$0xf]
  %v233 = vld [vmem:[%s1 + $0x4] sm:$0xf]
  %v234 = vld [vmem:[%s1 + $0x8] sm:$0xf]
  %v235 = vld [vmem:[%s1 + $0xc] sm:$0xf]
  %v236 = vld [vmem:[%s1 + $0x10] sm:$0x3]
  %v253 = vunpack.c.l.b16 %v216
  %v254 = vunpack.c.l.b16 %v217
  %v255 = vunpack.c.l.b16 %v218
  %v256 = vunpack.c.l.b16 %v219
  %v257 = vunpack.c.l.b16 %v220
  %v258 = vunpack.c.l.b16 %v221
  %v259 = vunpack.c.l.b16 %v222
  %v260 = vunpack.c.l.b16 %v223
  %v261 = vunpack.c.l.b16 %v224
  %v262 = vunpack.c.l.b16 %v225
  %v263 = vunpack.c.l.b16 %v226
  %v264 = vunpack.c.l.b16 %v227
  %v265 = vunpack.c.l.b16 %v228
  %v266 = vunpack.c.l.b16 %v229
  %v267 = vunpack.c.l.b16 %v230
  %v268 = vunpack.c.l.b16 %v231
  %v269 = vpack.c.b16 %v254, %v253
  %v270 = vpack.c.b16 %v256, %v255
  %v271 = vpack.c.b16 %v258, %v257
  %v272 = vpack.c.b16 %v260, %v259
  %v273 = vpack.c.b16 %v262, %v261
  %v274 = vpack.c.b16 %v264, %v263
  %v275 = vpack.c.b16 %v266, %v265
  %v276 = vpack.c.b16 %v268, %v267
  %v282 = vunpack.c.l.b16 %v232
  %v283 = vunpack.c.l.b16 %v233
  %v284 = vunpack.c.l.b16 %v234
  %v285 = vunpack.c.l.b16 %v235
  %v286 = vunpack.c.l.b16 %v236
  %v287 = vpack.c.b16 %v283, %v282
  %v288 = vpack.c.b16 %v285, %v284
  %v289 = vpack.c.b16 %v286, %v286
  %vm292 = vcmask 293888
  %v294 = vsel %vm292, %v269, 0
  %v297 = vsel %vm292, %v270, 0
  %v300 = vsel %vm292, %v271, 0
  %v303 = vsel %vm292, %v272, 0
  %v306 = vsel %vm292, %v273, 0
  %v309 = vsel %vm292, %v274, 0
  %v312 = vsel %vm292, %v275, 0
  %v315 = vsel %vm292, %v276, 0
  %v318 = vsel %vm115, %v289, 0
  %320 = vmatprep.subr.bf16.mxu0 0
  %321 = vmatpush1.bf16.msra.mxu0 %v287
  %322 = vmatprep.subr.bf16.mxu0 0
  %323 = vmatpush1.bf16.msra.mxu0 %v288
  %324 = vmatprep.subr.bf16.mxu0 0
  %325 = vmatpush1.bf16.msra.mxu0 %v318
  %326 = vmatprep.subr.bf16.mxu0 0
  %327 = vmatpush1.bf16.msra.mxu0 0
  %328 = vmatprep.subr.bf16.mxu0 0
  %329 = vmatpush1.bf16.msra.mxu0 0
  %330 = vmatprep.subr.bf16.mxu0 0
  %331 = vmatpush1.bf16.msra.mxu0 0
  %332 = vmatprep.subr.bf16.mxu0 0
  %333 = vmatpush1.bf16.msra.mxu0 0
  %334 = vmatprep.subr.bf16.mxu0 0
  %335 = vmatpush1.bf16.msra.mxu0 0
  %336 = vmatprep.subr.bf16.mxu0 0
  %337 = vmatpush1.bf16.msra.mxu0 0
  %338 = vmatprep.subr.bf16.mxu0 0
  %339 = vmatpush1.bf16.msra.mxu0 0
  %340 = vmatprep.subr.bf16.mxu0 0
  %341 = vmatpush1.bf16.msra.mxu0 0
  %342 = vmatprep.subr.bf16.mxu0 0
  %343 = vmatpush1.bf16.msra.mxu0 0
  %344 = vmatprep.subr.bf16.mxu0 0
  %345 = vmatpush1.bf16.msra.mxu0 0
  %346 = vmatprep.subr.bf16.mxu0 0
  %347 = vmatpush1.bf16.msra.mxu0 0
  %348 = vmatprep.subr.bf16.mxu0 0
  %349 = vmatpush1.bf16.msra.mxu0 0
  %350 = vmatprep.subr.bf16.mxu0 0
  %351 = vmatpush1.bf16.msra.mxu0 0
  %352 = vmatprep.mubr.bf16.mxu0 0
  %353 = vmatmul.mubr.bf16.gmra.mrb[0].mxu0 %v294
  %v354 = vpop.f32.mrb[0].mxu0
  %v355 = vadd.f32 0.0, %v354
  %v356 = vpop.f32.mrb[0].mxu0
  %v357 = vpop.f32.mrb[0].mxu0
  %v358 = vadd.f32 0.0, %v357
  %v359 = vpop.f32.mrb[0].mxu0
  %360 = vmatprep.mubr.bf16.mxu0 0
  %361 = vmatmul.mubr.bf16.gmra.mrb[0].mxu0 %v297
  %v362 = vpop.f32.mrb[0].mxu0
  %v363 = vadd.f32 0.0, %v362
  %v364 = vpop.f32.mrb[0].mxu0
  %v365 = vpop.f32.mrb[0].mxu0
  %v366 = vadd.f32 0.0, %v365
  %v367 = vpop.f32.mrb[0].mxu0
  %368 = vmatprep.mubr.bf16.mxu0 0
  %369 = vmatmul.mubr.bf16.gmra.mrb[0].mxu0 %v300
  %v370 = vpop.f32.mrb[0].mxu0
  %v371 = vadd.f32 0.0, %v370
  %v372 = vpop.f32.mrb[0].mxu0
  %v373 = vpop.f32.mrb[0].mxu0
  %v374 = vadd.f32 0.0, %v373
  %v375 = vpop.f32.mrb[0].mxu0
  %376 = vmatprep.mubr.bf16.mxu0 0
  %377 = vmatmul.mubr.bf16.gmra.mrb[0].mxu0 %v303
  %v378 = vpop.f32.mrb[0].mxu0
  %v379 = vadd.f32 0.0, %v378
  %v380 = vpop.f32.mrb[0].mxu0
  %v381 = vpop.f32.mrb[0].mxu0
  %v382 = vadd.f32 0.0, %v381
  %v383 = vpop.f32.mrb[0].mxu0
  %384 = vmatprep.mubr.bf16.mxu0 0
  %385 = vmatmul.mubr.bf16.gmra.mrb[0].mxu0 %v306
  %v386 = vpop.f32.mrb[0].mxu0
  %v387 = vadd.f32 0.0, %v386
  %v388 = vpop.f32.mrb[0].mxu0
  %v389 = vpop.f32.mrb[0].mxu0
  %v390 = vadd.f32 0.0, %v389
  %v391 = vpop.f32.mrb[0].mxu0
  %392 = vmatprep.mubr.bf16.mxu0 0
  %393 = vmatmul.mubr.bf16.gmra.mrb[0].mxu0 %v309
  %v394 = vpop.f32.mrb[0].mxu0
  %v395 = vadd.f32 0.0, %v394
  %v396 = vpop.f32.mrb[0].mxu0
  %v397 = vpop.f32.mrb[0].mxu0
  %v398 = vadd.f32 0.0, %v397
  %v399 = vpop.f32.mrb[0].mxu0
  %400 = vmatprep.mubr.bf16.mxu0 0
  %401 = vmatmul.mubr.bf16.gmra.mrb[0].mxu0 %v312
  %v402 = vpop.f32.mrb[0].mxu0
  %v403 = vadd.f32 0.0, %v402
  %v404 = vpop.f32.mrb[0].mxu0
  %v405 = vpop.f32.mrb[0].mxu0
  %v406 = vadd.f32 0.0, %v405
  %v407 = vpop.f32.mrb[0].mxu0
  %408 = vmatprep.mubr.bf16.mxu0 0
  %409 = vmatmul.mubr.bf16.gmra.mrb[0].mxu0 %v315
  %v410 = vpop.f32.mrb[0].mxu0
  %v411 = vadd.f32 0.0, %v410
  %v412 = vpop.f32.mrb[0].mxu0
  %v413 = vpop.f32.mrb[0].mxu0
  %v414 = vadd.f32 0.0, %v413
  %v415 = vpop.f32.mrb[0].mxu0
  %416 = vdwg.mxu0
  %v417 = vld [vmem:[%s2] sm:$0x1]
  %v418 = vld [vmem:[%s3] sm:$0x1]
  %vm419 = vcmask 64512
  %v420 = vsel %vm419, %v355, 0.0
  %v421 = vsel %vm419, %v358, 0.0
  %v422 = vadd.f32 %v420, %v421
  %v423 = vsel %vm419, %v363, 0.0
  %v424 = vadd.f32 %v422, %v423
  %v425 = vsel %vm419, %v366, 0.0
  %v426 = vadd.f32 %v424, %v425
  %v427 = vsel %vm419, %v371, 0.0
  %v428 = vadd.f32 %v426, %v427
  %v429 = vsel %vm419, %v374, 0.0
  %v430 = vadd.f32 %v428, %v429
  %v431 = vsel %vm419, %v379, 0.0
  %v432 = vadd.f32 %v430, %v431
  %v433 = vsel %vm419, %v382, 0.0
  %v434 = vadd.f32 %v432, %v433
  %v435 = vsel %vm419, %v387, 0.0
  %v436 = vadd.f32 %v434, %v435
  %v437 = vsel %vm419, %v390, 0.0
  %v438 = vadd.f32 %v436, %v437
  %v439 = vsel %vm419, %v395, 0.0
  %v440 = vadd.f32 %v438, %v439
  %v441 = vsel %vm419, %v398, 0.0
  %v442 = vadd.f32 %v440, %v441
  %v443 = vsel %vm419, %v403, 0.0
  %v444 = vadd.f32 %v442, %v443
  %v445 = vsel %vm419, %v406, 0.0
  %v446 = vadd.f32 %v444, %v445
  %v447 = vsel %vm419, %v411, 0.0
  %v448 = vadd.f32 %v446, %v447
  %v449 = vsel %vm419, %v414, 0.0
  %v450 = vadd.f32 %v448, %v449
  %v451 = vrot.slane %v450, 4
  %v452 = vadd.f32 %v450, %v451
  %v453 = vrot.slane %v452, 2
  %v454 = vadd.f32 %v452, %v453
  %v455 = vrot.slane %v454, 1
  %v456 = vadd.f32 %v454, %v455
  %v457 = vrcp.pop 128.0
  %v458 = vmul.f32 %v456, %v457
  %v459 = vmul.f32 %v355, %v355
  %v460 = vmul.f32 %v358, %v358
  %v461 = vmul.f32 %v363, %v363
  %v462 = vmul.f32 %v366, %v366
  %v463 = vmul.f32 %v371, %v371
  %v464 = vmul.f32 %v374, %v374
  %v465 = vmul.f32 %v379, %v379
  %v466 = vmul.f32 %v382, %v382
  %v467 = vmul.f32 %v387, %v387
  %v468 = vmul.f32 %v390, %v390
  %v469 = vmul.f32 %v395, %v395
  %v470 = vmul.f32 %v398, %v398
  %v471 = vmul.f32 %v403, %v403
  %v472 = vmul.f32 %v406, %v406
  %v473 = vmul.f32 %v411, %v411
  %v474 = vmul.f32 %v414, %v414
  %v475 = vsel %vm419, %v459, 0.0
  %v476 = vsel %vm419, %v460, 0.0
  %v477 = vadd.f32 %v475, %v476
  %v478 = vsel %vm419, %v461, 0.0
  %v479 = vadd.f32 %v477, %v478
  %v480 = vsel %vm419, %v462, 0.0
  %v481 = vadd.f32 %v479, %v480
  %v482 = vsel %vm419, %v463, 0.0
  %v483 = vadd.f32 %v481, %v482
  %v484 = vsel %vm419, %v464, 0.0
  %v485 = vadd.f32 %v483, %v484
  %v486 = vsel %vm419, %v465, 0.0
  %v487 = vadd.f32 %v485, %v486
  %v488 = vsel %vm419, %v466, 0.0
  %v489 = vadd.f32 %v487, %v488
  %v490 = vsel %vm419, %v467, 0.0
  %v491 = vadd.f32 %v489, %v490
  %v492 = vsel %vm419, %v468, 0.0
  %v493 = vadd.f32 %v491, %v492
  %v494 = vsel %vm419, %v469, 0.0
  %v495 = vadd.f32 %v493, %v494
  %v496 = vsel %vm419, %v470, 0.0
  %v497 = vadd.f32 %v495, %v496
  %v498 = vsel %vm419, %v471, 0.0
  %v499 = vadd.f32 %v497, %v498
  %v500 = vsel %vm419, %v472, 0.0
  %v501 = vadd.f32 %v499, %v500
  %v502 = vsel %vm419, %v473, 0.0
  %v503 = vadd.f32 %v501, %v502
  %v504 = vsel %vm419, %v474, 0.0
  %v505 = vadd.f32 %v503, %v504
  %v506 = vrot.slane %v505, 4
  %v507 = vadd.f32 %v505, %v506
  %v508 = vrot.slane %v507, 2
  %v509 = vadd.f32 %v507, %v508
  %v510 = vrot.slane %v509, 1
  %v511 = vadd.f32 %v509, %v510
  %v512 = vmul.f32 %v511, %v457
  %v513 = vmul.f32 %v458, %v458
  %v514 = vsub.f32 %v512, %v513
  %v515 = vmax.f32 %v514, 0.0
  %v516 = vsub.f32 %v355, %v458
  %v517 = vsub.f32 %v358, %v458
  %v518 = vsub.f32 %v363, %v458
  %v519 = vsub.f32 %v366, %v458
  %v520 = vsub.f32 %v371, %v458
  %v521 = vsub.f32 %v374, %v458
  %v522 = vsub.f32 %v379, %v458
  %v523 = vsub.f32 %v382, %v458
  %v524 = vsub.f32 %v387, %v458
  %v525 = vsub.f32 %v390, %v458
  %v526 = vsub.f32 %v395, %v458
  %v527 = vsub.f32 %v398, %v458
  %v528 = vsub.f32 %v403, %v458
  %v529 = vsub.f32 %v406, %v458
  %v530 = vsub.f32 %v411, %v458
  %v531 = vsub.f32 %v414, %v458
  %v532 = vadd.f32 %v515, 1e-05
  %v533 = vrsqrt.pop %v532
  %v534 = vmul.f32 %v516, %v533
  %v535 = vmul.f32 %v517, %v533
  %v536 = vmul.f32 %v518, %v533
  %v537 = vmul.f32 %v519, %v533
  %v538 = vmul.f32 %v520, %v533
  %v539 = vmul.f32 %v521, %v533
  %v540 = vmul.f32 %v522, %v533
  %v541 = vmul.f32 %v523, %v533
  %v542 = vmul.f32 %v524, %v533
  %v543 = vmul.f32 %v525, %v533
  %v544 = vmul.f32 %v526, %v533
  %v545 = vmul.f32 %v527, %v533
  %v546 = vmul.f32 %v528, %v533
  %v547 = vmul.f32 %v529, %v533
  %v548 = vmul.f32 %v530, %v533
  %v549 = vmul.f32 %v531, %v533
  %v551 = vlaneseq
  %v552 = vshrl.u32 %v551, 7
  %v553 = vsub.s32 0, %v552
  %v554 = vrot.slane %v417, %v553
  %v556 = vmul.f32 %v534, %v554
  %v557 = vmul.f32 %v535, %v554
  %v558 = vmul.f32 %v536, %v554
  %v559 = vmul.f32 %v537, %v554
  %v560 = vmul.f32 %v538, %v554
  %v561 = vmul.f32 %v539, %v554
  %v562 = vmul.f32 %v540, %v554
  %v563 = vmul.f32 %v541, %v554
  %v564 = vmul.f32 %v542, %v554
  %v565 = vmul.f32 %v543, %v554
  %v566 = vmul.f32 %v544, %v554
  %v567 = vmul.f32 %v545, %v554
  %v568 = vmul.f32 %v546, %v554
  %v569 = vmul.f32 %v547, %v554
  %v570 = vmul.f32 %v548, %v554
  %v571 = vmul.f32 %v549, %v554
  %v573 = vlaneseq
  %v574 = vshrl.u32 %v573, 7
  %v575 = vsub.s32 0, %v574
  %v576 = vrot.slane %v418, %v575
  %v578 = vadd.f32 %v556, %v576
  %v579 = vadd.f32 %v557, %v576
  %v580 = vadd.f32 %v558, %v576
  %v581 = vadd.f32 %v559, %v576
  %v582 = vadd.f32 %v560, %v576
  %v583 = vadd.f32 %v561, %v576
  %v584 = vadd.f32 %v562, %v576
  %v585 = vadd.f32 %v563, %v576
  %v586 = vadd.f32 %v564, %v576
  %v587 = vadd.f32 %v565, %v576
  %v588 = vadd.f32 %v566, %v576
  %v589 = vadd.f32 %v567, %v576
  %v590 = vadd.f32 %v568, %v576
  %v591 = vadd.f32 %v569, %v576
  %v592 = vadd.f32 %v570, %v576
  %v593 = vadd.f32 %v571, %v576
  %v594 = vmax.f32 %v578, 0.0
  %v595 = vmax.f32 %v579, 0.0
  %v596 = vmax.f32 %v580, 0.0
  %v597 = vmax.f32 %v581, 0.0
  %v598 = vmax.f32 %v582, 0.0
  %v599 = vmax.f32 %v583, 0.0
  %v600 = vmax.f32 %v584, 0.0
  %v601 = vmax.f32 %v585, 0.0
  %v602 = vmax.f32 %v586, 0.0
  %v603 = vmax.f32 %v587, 0.0
  %v604 = vmax.f32 %v588, 0.0
  %v605 = vmax.f32 %v589, 0.0
  %v606 = vmax.f32 %v590, 0.0
  %v607 = vmax.f32 %v591, 0.0
  %v608 = vmax.f32 %v592, 0.0
  %v609 = vmax.f32 %v593, 0.0
  %610 = vst.msk [vmem:[#allocation2] sm:$0xff] %vm419, 0.0
  %vm611 = vcmask 58368
  %612 = vst.msk [vmem:[#allocation2 + $0x8] sm:$0x3] %vm611, 0.0
  %613 = vst.msk [vmem:[#allocation2 + $0x10] sm:$0xff] %vm419, 0.0
  %614 = vst.msk [vmem:[#allocation2 + $0x18] sm:$0x3] %vm611, 0.0
  %615 = vst.msk [vmem:[#allocation2 + $0x20] sm:$0xff] %vm419, 0.0
  %616 = vst.msk [vmem:[#allocation2 + $0x28] sm:$0x3] %vm611, 0.0
  %617 = vst.msk [vmem:[#allocation2 + $0x30] sm:$0xff] %vm419, 0.0
  %618 = vst.msk [vmem:[#allocation2 + $0x38] sm:$0x3] %vm611, 0.0
  %619 = vst.msk [vmem:[#allocation2 + $0x40] sm:$0xff] %vm419, 0.0
  %620 = vst.msk [vmem:[#allocation2 + $0x48] sm:$0x3] %vm611, 0.0
  %621 = vst.msk [vmem:[#allocation2 + $0x50] sm:$0xff] %vm419, 0.0
  %622 = vst.msk [vmem:[#allocation2 + $0x58] sm:$0x3] %vm611, 0.0
  %623 = vst.msk [vmem:[#allocation2 + $0x60] sm:$0xff] %vm419, 0.0
  %624 = vst.msk [vmem:[#allocation2 + $0x68] sm:$0x3] %vm611, 0.0
  %625 = vst.msk [vmem:[#allocation2 + $0x70] sm:$0xff] %vm419, 0.0
  %626 = vst.msk [vmem:[#allocation2 + $0x78] sm:$0x3] %vm611, 0.0
  %627 = vst.msk [vmem:[#allocation2 + $0x80] sm:$0xff] %vm419, 0.0
  %628 = vst.msk [vmem:[#allocation2 + $0x88] sm:$0x3] %vm611, 0.0
  %629 = vst.msk [vmem:[#allocation2 + $0x90] sm:$0xff] %vm419, 0.0
  %630 = vst.msk [vmem:[#allocation2 + $0x98] sm:$0x3] %vm611, 0.0
  %631 = vst.msk [vmem:[#allocation2 + $0xa0] sm:$0xff] %vm419, 0.0
  %632 = vst.msk [vmem:[#allocation2 + $0xa8] sm:$0x3] %vm611, 0.0
  %633 = vst.msk [vmem:[#allocation2 + $0xb0] sm:$0xff] %vm419, 0.0
  %634 = vst.msk [vmem:[#allocation2 + $0xb8] sm:$0x3] %vm611, 0.0
  %635 = vst.msk [vmem:[#allocation2 + $0xc0] sm:$0xff] %vm419, 0.0
  %636 = vst.msk [vmem:[#allocation2 + $0xc8] sm:$0x3] %vm611, 0.0
  %637 = vst.msk [vmem:[#allocation2 + $0xd0] sm:$0xff] %vm419, 0.0
  %638 = vst.msk [vmem:[#allocation2 + $0xd8] sm:$0x3] %vm611, 0.0
  %639 = vst.msk [vmem:[#allocation2 + $0xe0] sm:$0xff] %vm419, 0.0
  %640 = vst.msk [vmem:[#allocation2 + $0xe8] sm:$0x3] %vm611, 0.0
  %641 = vst.msk [vmem:[#allocation2 + $0xf0] sm:$0xff] %vm419, 0.0
  %642 = vst.msk [vmem:[#allocation2 + $0xf8] sm:$0x3] %vm611, 0.0
  %643 = vst.msk [vmem:[#allocation2 + $0x100] sm:$0xff] %vm419, 0.0
  %644 = vst.msk [vmem:[#allocation2 + $0x108] sm:$0x3] %vm611, 0.0
  %645 = vst.msk [vmem:[#allocation2 + $0x110] sm:$0xff] %vm419, 0.0
  %646 = vst.msk [vmem:[#allocation2 + $0x118] sm:$0x3] %vm611, 0.0
  %647 = vst.msk [vmem:[#allocation2 + $0x120] sm:$0xff] %vm419, 0.0
  %648 = vst.msk [vmem:[#allocation2 + $0x128] sm:$0x3] %vm611, 0.0
  %649 = vst.msk [vmem:[#allocation2 + $0x130] sm:$0xff] %vm419, 0.0
  %650 = vst.msk [vmem:[#allocation2 + $0x138] sm:$0x3] %vm611, 0.0
  %s651 = scalar_lea.vmem [#allocation2], 16
  %652 = vst.msk [vmem:[%s651 + $0x1] sm:$0xff] %vm419, %v594
  %653 = vst.msk [vmem:[%s651 + $0x11] sm:$0xff] %vm419, %v595
  %654 = vst.msk [vmem:[%s651 + $0x21] sm:$0xff] %vm419, %v596
  %655 = vst.msk [vmem:[%s651 + $0x31] sm:$0xff] %vm419, %v597
  %656 = vst.msk [vmem:[%s651 + $0x41] sm:$0xff] %vm419, %v598
  %657 = vst.msk [vmem:[%s651 + $0x51] sm:$0xff] %vm419, %v599
  %658 = vst.msk [vmem:[%s651 + $0x61] sm:$0xff] %vm419, %v600
  %659 = vst.msk [vmem:[%s651 + $0x71] sm:$0xff] %vm419, %v601
  %660 = vst.msk [vmem:[%s651 + $0xa1] sm:$0xff] %vm419, %v602
  %661 = vst.msk [vmem:[%s651 + $0xb1] sm:$0xff] %vm419, %v603
  %662 = vst.msk [vmem:[%s651 + $0xc1] sm:$0xff] %vm419, %v604
  %663 = vst.msk [vmem:[%s651 + $0xd1] sm:$0xff] %vm419, %v605
  %664 = vst.msk [vmem:[%s651 + $0xe1] sm:$0xff] %vm419, %v606
  %665 = vst.msk [vmem:[%s651 + $0xf1] sm:$0xff] %vm419, %v607
  %666 = vst.msk [vmem:[%s651 + $0x101] sm:$0xff] %vm419, %v608
  %667 = vst.msk [vmem:[%s651 + $0x111] sm:$0xff] %vm419, %v609
  %v668 = vld [vmem:[#allocation2] sm:$0xff]
  %v669 = vld [vmem:[#allocation2 + $0x10] sm:$0xff]
  %v670 = vld [vmem:[#allocation2 + $0x20] sm:$0xff]
  %v671 = vld [vmem:[#allocation2 + $0x30] sm:$0xff]
  %v672 = vld [vmem:[#allocation2 + $0x40] sm:$0xff]
  %v673 = vld [vmem:[#allocation2 + $0x50] sm:$0xff]
  %v674 = vld [vmem:[#allocation2 + $0x60] sm:$0xff]
  %v675 = vld [vmem:[#allocation2 + $0x70] sm:$0xff]
  %v676 = vld [vmem:[#allocation2 + $0xa0] sm:$0xff]
  %v677 = vld [vmem:[#allocation2 + $0xb0] sm:$0xff]
  %v678 = vld [vmem:[#allocation2 + $0xc0] sm:$0xff]
  %v679 = vld [vmem:[#allocation2 + $0xd0] sm:$0xff]
  %v680 = vld [vmem:[#allocation2 + $0xe0] sm:$0xff]
  %v681 = vld [vmem:[#allocation2 + $0xf0] sm:$0xff]
  %v682 = vld [vmem:[#allocation2 + $0x100] sm:$0xff]
  %v683 = vld [vmem:[#allocation2 + $0x110] sm:$0xff]
  %v684 = vpack.c.bf16 %v669, %v668
  %v685 = vpack.c.bf16 %v671, %v670
  %v686 = vpack.c.bf16 %v673, %v672
  %v687 = vpack.c.bf16 %v675, %v674
  %v688 = vpack.c.bf16 %v677, %v676
  %v689 = vpack.c.bf16 %v679, %v678
  %v690 = vpack.c.bf16 %v681, %v680
  %v691 = vpack.c.bf16 %v683, %v682
  %v692 = vld [vmem:[%s4] sm:$0xf]
  %v693 = vld [vmem:[#allocation2 + $0x1] sm:$0xff]
  %v694 = vld [vmem:[#allocation2 + $0x11] sm:$0xff]
  %v695 = vld [vmem:[#allocation2 + $0x21] sm:$0xff]
  %v696 = vld [vmem:[#allocation2 + $0x31] sm:$0xff]
  %v697 = vld [vmem:[#allocation2 + $0x41] sm:$0xff]
  %v698 = vld [vmem:[#allocation2 + $0x51] sm:$0xff]
  %v699 = vld [vmem:[#allocation2 + $0x61] sm:$0xff]
  %v700 = vld [vmem:[#allocation2 + $0x71] sm:$0xff]
  %v701 = vld [vmem:[#allocation2 + $0xa1] sm:$0xff]
  %v702 = vld [vmem:[#allocation2 + $0xb1] sm:$0xff]
  %v703 = vld [vmem:[#allocation2 + $0xc1] sm:$0xff]
  %v704 = vld [vmem:[#allocation2 + $0xd1] sm:$0xff]
  %v705 = vld [vmem:[#allocation2 + $0xe1] sm:$0xff]
  %v706 = vld [vmem:[#allocation2 + $0xf1] sm:$0xff]
  %v707 = vld [vmem:[#allocation2 + $0x101] sm:$0xff]
  %v708 = vld [vmem:[#allocation2 + $0x111] sm:$0xff]
  %v709 = vpack.c.bf16 %v694, %v693
  %v710 = vpack.c.bf16 %v696, %v695
  %v711 = vpack.c.bf16 %v698, %v697
  %v712 = vpack.c.bf16 %v700, %v699
  %v713 = vpack.c.bf16 %v702, %v701
  %v714 = vpack.c.bf16 %v704, %v703
  %v715 = vpack.c.bf16 %v706, %v705
  %v716 = vpack.c.bf16 %v708, %v707
  %s717 = scalar_lea.vmem %s4, 4
  %v718 = vld [vmem:[%s717] sm:$0xf]
  %v720 = vsel %vm419, %v709, 0
  %v723 = vsel %vm419, %v710, 0
  %v726 = vsel %vm419, %v711, 0
  %v729 = vsel %vm419, %v712, 0
  %v732 = vsel %vm419, %v713, 0
  %v735 = vsel %vm419, %v714, 0
  %v738 = vsel %vm419, %v715, 0
  %v741 = vsel %vm419, %v716, 0
  %vm743 = vcmask 1043456
  %v745 = vsel %vm743, %v718, 0
  %747 = vmatprep.subr.bf16.mxu0 0
  %748 = vmatpush1.bf16.msra.mxu0 %v745
  %749 = vmatprep.subr.bf16.mxu0 0
  %750 = vmatpush1.bf16.msra.mxu0 0
  %751 = vmatprep.subr.bf16.mxu0 0
  %752 = vmatpush1.bf16.msra.mxu0 0
  %753 = vmatprep.subr.bf16.mxu0 0
  %754 = vmatpush1.bf16.msra.mxu0 0
  %755 = vmatprep.subr.bf16.mxu0 0
  %756 = vmatpush1.bf16.msra.mxu0 0
  %757 = vmatprep.subr.bf16.mxu0 0
  %758 = vmatpush1.bf16.msra.mxu0 0
  %759 = vmatprep.subr.bf16.mxu0 0
  %760 = vmatpush1.bf16.msra.mxu0 0
  %761 = vmatprep.subr.bf16.mxu0 0
  %762 = vmatpush1.bf16.msra.mxu0 0
  %763 = vmatprep.subr.bf16.mxu0 0
  %764 = vmatpush1.bf16.msra.mxu0 0
  %765 = vmatprep.subr.bf16.mxu0 0
  %766 = vmatpush1.bf16.msra.mxu0 0
  %767 = vmatprep.subr.bf16.mxu0 0
  %768 = vmatpush1.bf16.msra.mxu0 0
  %769 = vmatprep.subr.bf16.mxu0 0
  %770 = vmatpush1.bf16.msra.mxu0 0
  %771 = vmatprep.subr.bf16.mxu0 0
  %772 = vmatpush1.bf16.msra.mxu0 0
  %773 = vmatprep.subr.bf16.mxu0 0
  %774 = vmatpush1.bf16.msra.mxu0 0
  %775 = vmatprep.subr.bf16.mxu0 0
  %776 = vmatpush1.bf16.msra.mxu0 0
  %777 = vmatprep.subr.bf16.mxu0 0
  %778 = vmatpush1.bf16.msra.mxu0 0
  %779 = vmatprep.mubr.bf16.mxu0 0
  %780 = vmatmul.mubr.bf16.gmra.mrb[0].mxu0 %v720
  %v781 = vpop.f32.mrb[0].mxu0
  %v782 = vadd.f32 0.0, %v781
  %v783 = vpop.f32.mrb[0].mxu0
  %v784 = vpop.f32.mrb[0].mxu0
  %v785 = vadd.f32 0.0, %v784
  %v786 = vpop.f32.mrb[0].mxu0
  %787 = vmatprep.mubr.bf16.mxu0 0
  %788 = vmatmul.mubr.bf16.gmra.mrb[0].mxu0 %v723
  %v789 = vpop.f32.mrb[0].mxu0
  %v790 = vadd.f32 0.0, %v789
  %v791 = vpop.f32.mrb[0].mxu0
  %v792 = vpop.f32.mrb[0].mxu0
  %v793 = vadd.f32 0.0, %v792
  %v794 = vpop.f32.mrb[0].mxu0
  %795 = vmatprep.mubr.bf16.mxu0 0
  %796 = vmatmul.mubr.bf16.gmra.mrb[0].mxu0 %v726
  %v797 = vpop.f32.mrb[0].mxu0
  %v798 = vadd.f32 0.0, %v797
  %v799 = vpop.f32.mrb[0].mxu0
  %v800 = vpop.f32.mrb[0].mxu0
  %v801 = vadd.f32 0.0, %v800
  %v802 = vpop.f32.mrb[0].mxu0
  %803 = vmatprep.mubr.bf16.mxu0 0
  %804 = vmatmul.mubr.bf16.gmra.mrb[0].mxu0 %v729
  %v805 = vpop.f32.mrb[0].mxu0
  %v806 = vadd.f32 0.0, %v805
  %v807 = vpop.f32.mrb[0].mxu0
  %v808 = vpop.f32.mrb[0].mxu0
  %v809 = vadd.f32 0.0, %v808
  %v810 = vpop.f32.mrb[0].mxu0
  %811 = vmatprep.mubr.bf16.mxu0 0
  %812 = vmatmul.mubr.bf16.gmra.mrb[0].mxu0 %v732
  %v813 = vpop.f32.mrb[0].mxu0
  %v814 = vadd.f32 0.0, %v813
  %v815 = vpop.f32.mrb[0].mxu0
  %v816 = vpop.f32.mrb[0].mxu0
  %v817 = vadd.f32 0.0, %v816
  %v818 = vpop.f32.mrb[0].mxu0
  %819 = vmatprep.mubr.bf16.mxu0 0
  %820 = vmatmul.mubr.bf16.gmra.mrb[0].mxu0 %v735
  %v821 = vpop.f32.mrb[0].mxu0
  %v822 = vadd.f32 0.0, %v821
  %v823 = vpop.f32.mrb[0].mxu0
  %v824 = vpop.f32.mrb[0].mxu0
  %v825 = vadd.f32 0.0, %v824
  %v826 = vpop.f32.mrb[0].mxu0
  %827 = vmatprep.mubr.bf16.mxu0 0
  %828 = vmatmul.mubr.bf16.gmra.mrb[0].mxu0 %v738
  %v829 = vpop.f32.mrb[0].mxu0
  %v830 = vadd.f32 0.0, %v829
  %v831 = vpop.f32.mrb[0].mxu0
  %v832 = vpop.f32.mrb[0].mxu0
  %v833 = vadd.f32 0.0, %v832
  %v834 = vpop.f32.mrb[0].mxu0
  %835 = vmatprep.mubr.bf16.mxu0 0
  %836 = vmatmul.mubr.bf16.gmra.mrb[0].mxu0 %v741
  %v837 = vpop.f32.mrb[0].mxu0
  %v838 = vadd.f32 0.0, %v837
  %v839 = vpop.f32.mrb[0].mxu0
  %v840 = vpop.f32.mrb[0].mxu0
  %v841 = vadd.f32 0.0, %v840
  %v842 = vpop.f32.mrb[0].mxu0
  %843 = vdwg.mxu0
  %v845 = vsel %vm419, %v684, 0
  %v848 = vsel %vm419, %v685, 0
  %v851 = vsel %vm419, %v686, 0
  %v854 = vsel %vm419, %v687, 0
  %v857 = vsel %vm419, %v688, 0
  %v860 = vsel %vm419, %v689, 0
  %v863 = vsel %vm419, %v690, 0
  %v866 = vsel %vm419, %v691, 0
  %v869 = vsel %vm743, %v692, 0
  %871 = vmatprep.subr.bf16.mxu0 0
  %872 = vmatpush1.bf16.msra.mxu0 %v869
  %873 = vmatprep.subr.bf16.mxu0 0
  %874 = vmatpush1.bf16.msra.mxu0 0
  %875 = vmatprep.subr.bf16.mxu0 0
  %876 = vmatpush1.bf16.msra.mxu0 0
  %877 = vmatprep.subr.bf16.mxu0 0
  %878 = vmatpush1.bf16.msra.mxu0 0
  %879 = vmatprep.subr.bf16.mxu0 0
  %880 = vmatpush1.bf16.msra.mxu0 0
  %881 = vmatprep.subr.bf16.mxu0 0
  %882 = vmatpush1.bf16.msra.mxu0 0
  %883 = vmatprep.subr.bf16.mxu0 0
  %884 = vmatpush1.bf16.msra.mxu0 0
  %885 = vmatprep.subr.bf16.mxu0 0
  %886 = vmatpush1.bf16.msra.mxu0 0
  %887 = vmatprep.subr.bf16.mxu0 0
  %888 = vmatpush1.bf16.msra.mxu0 0
  %889 = vmatprep.subr.bf16.mxu0 0
  %890 = vmatpush1.bf16.msra.mxu0 0
  %891 = vmatprep.subr.bf16.mxu0 0
  %892 = vmatpush1.bf16.msra.mxu0 0
  %893 = vmatprep.subr.bf16.mxu0 0
  %894 = vmatpush1.bf16.msra.mxu0 0
  %895 = vmatprep.subr.bf16.mxu0 0
  %896 = vmatpush1.bf16.msra.mxu0 0
  %897 = vmatprep.subr.bf16.mxu0 0
  %898 = vmatpush1.bf16.msra.mxu0 0
  %899 = vmatprep.subr.bf16.mxu0 0
  %900 = vmatpush1.bf16.msra.mxu0 0
  %901 = vmatprep.subr.bf16.mxu0 0
  %902 = vmatpush1.bf16.msra.mxu0 0
  %903 = vmatprep.mubr.bf16.mxu0 0
  %904 = vmatmul.mubr.bf16.gmra.mrb[0].mxu0 %v845
  %v905 = vpop.f32.mrb[0].mxu0
  %v906 = vadd.f32 %v782, %v905
  %v907 = vpop.f32.mrb[0].mxu0
  %v908 = vpop.f32.mrb[0].mxu0
  %v909 = vadd.f32 %v785, %v908
  %v910 = vpop.f32.mrb[0].mxu0
  %911 = vmatprep.mubr.bf16.mxu0 0
  %912 = vmatmul.mubr.bf16.gmra.mrb[0].mxu0 %v848
  %v913 = vpop.f32.mrb[0].mxu0
  %v914 = vadd.f32 %v790, %v913
  %v915 = vpop.f32.mrb[0].mxu0
  %v916 = vpop.f32.mrb[0].mxu0
  %v917 = vadd.f32 %v793, %v916
  %v918 = vpop.f32.mrb[0].mxu0
  %919 = vmatprep.mubr.bf16.mxu0 0
  %920 = vmatmul.mubr.bf16.gmra.mrb[0].mxu0 %v851
  %v921 = vpop.f32.mrb[0].mxu0
  %v922 = vadd.f32 %v798, %v921
  %v923 = vpop.f32.mrb[0].mxu0
  %v924 = vpop.f32.mrb[0].mxu0
  %v925 = vadd.f32 %v801, %v924
  %v926 = vpop.f32.mrb[0].mxu0
  %927 = vmatprep.mubr.bf16.mxu0 0
  %928 = vmatmul.mubr.bf16.gmra.mrb[0].mxu0 %v854
  %v929 = vpop.f32.mrb[0].mxu0
  %v930 = vadd.f32 %v806, %v929
  %v931 = vpop.f32.mrb[0].mxu0
  %v932 = vpop.f32.mrb[0].mxu0
  %v933 = vadd.f32 %v809, %v932
  %v934 = vpop.f32.mrb[0].mxu0
  %935 = vmatprep.mubr.bf16.mxu0 0
  %936 = vmatmul.mubr.bf16.gmra.mrb[0].mxu0 %v857
  %v937 = vpop.f32.mrb[0].mxu0
  %v938 = vadd.f32 %v814, %v937
  %v939 = vpop.f32.mrb[0].mxu0
  %v940 = vpop.f32.mrb[0].mxu0
  %v941 = vadd.f32 %v817, %v940
  %v942 = vpop.f32.mrb[0].mxu0
  %943 = vmatprep.mubr.bf16.mxu0 0
  %944 = vmatmul.mubr.bf16.gmra.mrb[0].mxu0 %v860
  %v945 = vpop.f32.mrb[0].mxu0
  %v946 = vadd.f32 %v822, %v945
  %v947 = vpop.f32.mrb[0].mxu0
  %v948 = vpop.f32.mrb[0].mxu0
  %v949 = vadd.f32 %v825, %v948
  %v950 = vpop.f32.mrb[0].mxu0
  %951 = vmatprep.mubr.bf16.mxu0 0
  %952 = vmatmul.mubr.bf16.gmra.mrb[0].mxu0 %v863
  %v953 = vpop.f32.mrb[0].mxu0
  %v954 = vadd.f32 %v830, %v953
  %v955 = vpop.f32.mrb[0].mxu0
  %v956 = vpop.f32.mrb[0].mxu0
  %v957 = vadd.f32 %v833, %v956
  %v958 = vpop.f32.mrb[0].mxu0
  %959 = vmatprep.mubr.bf16.mxu0 0
  %960 = vmatmul.mubr.bf16.gmra.mrb[0].mxu0 %v866
  %v961 = vpop.f32.mrb[0].mxu0
  %v962 = vadd.f32 %v838, %v961
  %v963 = vpop.f32.mrb[0].mxu0
  %v964 = vpop.f32.mrb[0].mxu0
  %v965 = vadd.f32 %v841, %v964
  %v966 = vpop.f32.mrb[0].mxu0
  %967 = vdwg.mxu0
  %v968 = vld [vmem:[#allocation2 + $0x2] sm:$0xff]
  %v969 = vld [vmem:[#allocation2 + $0x12] sm:$0xff]
  %v970 = vld [vmem:[#allocation2 + $0x22] sm:$0xff]
  %v971 = vld [vmem:[#allocation2 + $0x32] sm:$0xff]
  %v972 = vld [vmem:[#allocation2 + $0x42] sm:$0xff]
  %v973 = vld [vmem:[#allocation2 + $0x52] sm:$0xff]
  %v974 = vld [vmem:[#allocation2 + $0x62] sm:$0xff]
  %v975 = vld [vmem:[#allocation2 + $0x72] sm:$0xff]
  %v976 = vld [vmem:[#allocation2 + $0xa2] sm:$0xff]
  %v977 = vld [vmem:[#allocation2 + $0xb2] sm:$0xff]
  %v978 = vld [vmem:[#allocation2 + $0xc2] sm:$0xff]
  %v979 = vld [vmem:[#allocation2 + $0xd2] sm:$0xff]
  %v980 = vld [vmem:[#allocation2 + $0xe2] sm:$0xff]
  %v981 = vld [vmem:[#allocation2 + $0xf2] sm:$0xff]
  %v982 = vld [vmem:[#allocation2 + $0x102] sm:$0xff]
  %v983 = vld [vmem:[#allocation2 + $0x112] sm:$0xff]
  %v984 = vpack.c.bf16 %v969, %v968
  %v985 = vpack.c.bf16 %v971, %v970
  %v986 = vpack.c.bf16 %v973, %v972
  %v987 = vpack.c.bf16 %v975, %v974
  %v988 = vpack.c.bf16 %v977, %v976
  %v989 = vpack.c.bf16 %v979, %v978
  %v990 = vpack.c.bf16 %v981, %v980
  %v991 = vpack.c.bf16 %v983, %v982
  %s992 = scalar_lea.vmem %s4, 8
  %v993 = vld [vmem:[%s992] sm:$0xf]
  %v995 = vsel %vm419, %v984, 0
  %v998 = vsel %vm419, %v985, 0
  %v1001 = vsel %vm419, %v986, 0
  %v1004 = vsel %vm419, %v987, 0
  %v1007 = vsel %vm419, %v988, 0
  %v1010 = vsel %vm419, %v989, 0
  %v1013 = vsel %vm419, %v990, 0
  %v1016 = vsel %vm419, %v991, 0
  %v1019 = vsel %vm743, %v993, 0
  %1021 = vmatprep.subr.bf16.mxu0 0
  %1022 = vmatpush1.bf16.msra.mxu0 %v1019
  %1023 = vmatprep.subr.bf16.mxu0 0
  %1024 = vmatpush1.bf16.msra.mxu0 0
  %1025 = vmatprep.subr.bf16.mxu0 0
  %1026 = vmatpush1.bf16.msra.mxu0 0
  %1027 = vmatprep.subr.bf16.mxu0 0
  %1028 = vmatpush1.bf16.msra.mxu0 0
  %1029 = vmatprep.subr.bf16.mxu0 0
  %1030 = vmatpush1.bf16.msra.mxu0 0
  %1031 = vmatprep.subr.bf16.mxu0 0
  %1032 = vmatpush1.bf16.msra.mxu0 0
  %1033 = vmatprep.subr.bf16.mxu0 0
  %1034 = vmatpush1.bf16.msra.mxu0 0
  %1035 = vmatprep.subr.bf16.mxu0 0
  %1036 = vmatpush1.bf16.msra.mxu0 0
  %1037 = vmatprep.subr.bf16.mxu0 0
  %1038 = vmatpush1.bf16.msra.mxu0 0
  %1039 = vmatprep.subr.bf16.mxu0 0
  %1040 = vmatpush1.bf16.msra.mxu0 0
  %1041 = vmatprep.subr.bf16.mxu0 0
  %1042 = vmatpush1.bf16.msra.mxu0 0
  %1043 = vmatprep.subr.bf16.mxu0 0
  %1044 = vmatpush1.bf16.msra.mxu0 0
  %1045 = vmatprep.subr.bf16.mxu0 0
  %1046 = vmatpush1.bf16.msra.mxu0 0
  %1047 = vmatprep.subr.bf16.mxu0 0
  %1048 = vmatpush1.bf16.msra.mxu0 0
  %1049 = vmatprep.subr.bf16.mxu0 0
  %1050 = vmatpush1.bf16.msra.mxu0 0
  %1051 = vmatprep.subr.bf16.mxu0 0
  %1052 = vmatpush1.bf16.msra.mxu0 0
  %1053 = vmatprep.mubr.bf16.mxu0 0
  %1054 = vmatmul.mubr.bf16.gmra.mrb[0].mxu0 %v995
  %v1055 = vpop.f32.mrb[0].mxu0
  %v1056 = vadd.f32 0.0, %v1055
  %v1057 = vpop.f32.mrb[0].mxu0
  %v1058 = vpop.f32.mrb[0].mxu0
  %v1059 = vadd.f32 0.0, %v1058
  %v1060 = vpop.f32.mrb[0].mxu0
  %1061 = vmatprep.mubr.bf16.mxu0 0
  %1062 = vmatmul.mubr.bf16.gmra.mrb[0].mxu0 %v998
  %v1063 = vpop.f32.mrb[0].mxu0
  %v1064 = vadd.f32 0.0, %v1063
  %v1065 = vpop.f32.mrb[0].mxu0
  %v1066 = vpop.f32.mrb[0].mxu0
  %v1067 = vadd.f32 0.0, %v1066
  %v1068 = vpop.f32.mrb[0].mxu0
  %1069 = vmatprep.mubr.bf16.mxu0 0
  %1070 = vmatmul.mubr.bf16.gmra.mrb[0].mxu0 %v1001
  %v1071 = vpop.f32.mrb[0].mxu0
  %v1072 = vadd.f32 0.0, %v1071
  %v1073 = vpop.f32.mrb[0].mxu0
  %v1074 = vpop.f32.mrb[0].mxu0
  %v1075 = vadd.f32 0.0, %v1074
  %v1076 = vpop.f32.mrb[0].mxu0
  %1077 = vmatprep.mubr.bf16.mxu0 0
  %1078 = vmatmul.mubr.bf16.gmra.mrb[0].mxu0 %v1004
  %v1079 = vpop.f32.mrb[0].mxu0
  %v1080 = vadd.f32 0.0, %v1079
  %v1081 = vpop.f32.mrb[0].mxu0
  %v1082 = vpop.f32.mrb[0].mxu0
  %v1083 = vadd.f32 0.0, %v1082
  %v1084 = vpop.f32.mrb[0].mxu0
  %1085 = vmatprep.mubr.bf16.mxu0 0
  %1086 = vmatmul.mubr.bf16.gmra.mrb[0].mxu0 %v1007
  %v1087 = vpop.f32.mrb[0].mxu0
  %v1088 = vadd.f32 0.0, %v1087
  %v1089 = vpop.f32.mrb[0].mxu0
  %v1090 = vpop.f32.mrb[0].mxu0
  %v1091 = vadd.f32 0.0, %v1090
  %v1092 = vpop.f32.mrb[0].mxu0
  %1093 = vmatprep.mubr.bf16.mxu0 0
  %1094 = vmatmul.mubr.bf16.gmra.mrb[0].mxu0 %v1010
  %v1095 = vpop.f32.mrb[0].mxu0
  %v1096 = vadd.f32 0.0, %v1095
  %v1097 = vpop.f32.mrb[0].mxu0
  %v1098 = vpop.f32.mrb[0].mxu0
  %v1099 = vadd.f32 0.0, %v1098
  %v1100 = vpop.f32.mrb[0].mxu0
  %1101 = vmatprep.mubr.bf16.mxu0 0
  %1102 = vmatmul.mubr.bf16.gmra.mrb[0].mxu0 %v1013
  %v1103 = vpop.f32.mrb[0].mxu0
  %v1104 = vadd.f32 0.0, %v1103
  %v1105 = vpop.f32.mrb[0].mxu0
  %v1106 = vpop.f32.mrb[0].mxu0
  %v1107 = vadd.f32 0.0, %v1106
  %v1108 = vpop.f32.mrb[0].mxu0
  %1109 = vmatprep.mubr.bf16.mxu0 0
  %1110 = vmatmul.mubr.bf16.gmra.mrb[0].mxu0 %v1016
  %v1111 = vpop.f32.mrb[0].mxu0
  %v1112 = vadd.f32 0.0, %v1111
  %v1113 = vpop.f32.mrb[0].mxu0
  %v1114 = vpop.f32.mrb[0].mxu0
  %v1115 = vadd.f32 0.0, %v1114
  %v1116 = vpop.f32.mrb[0].mxu0
  %1117 = vdwg.mxu0
  %v1118 = vadd.f32 %v906, %v1056
  %v1119 = vadd.f32 %v909, %v1059
  %v1120 = vadd.f32 %v914, %v1064
  %v1121 = vadd.f32 %v917, %v1067
  %v1122 = vadd.f32 %v922, %v1072
  %v1123 = vadd.f32 %v925, %v1075
  %v1124 = vadd.f32 %v930, %v1080
  %v1125 = vadd.f32 %v933, %v1083
  %v1126 = vadd.f32 %v938, %v1088
  %v1127 = vadd.f32 %v941, %v1091
  %v1128 = vadd.f32 %v946, %v1096
  %v1129 = vadd.f32 %v949, %v1099
  %v1130 = vadd.f32 %v954, %v1104
  %v1131 = vadd.f32 %v957, %v1107
  %v1132 = vadd.f32 %v962, %v1112
  %v1133 = vadd.f32 %v965, %v1115
  %v1134 = vld [vmem:[%s651] sm:$0xff]
  %v1135 = vld [vmem:[%s651 + $0x10] sm:$0xff]
  %v1136 = vld [vmem:[%s651 + $0x20] sm:$0xff]
  %v1137 = vld [vmem:[%s651 + $0x30] sm:$0xff]
  %v1138 = vld [vmem:[%s651 + $0x40] sm:$0xff]
  %v1139 = vld [vmem:[%s651 + $0x50] sm:$0xff]
  %v1140 = vld [vmem:[%s651 + $0x60] sm:$0xff]
  %v1141 = vld [vmem:[%s651 + $0x70] sm:$0xff]
  %v1142 = vld [vmem:[%s651 + $0xa0] sm:$0xff]
  %v1143 = vld [vmem:[%s651 + $0xb0] sm:$0xff]
  %v1144 = vld [vmem:[%s651 + $0xc0] sm:$0xff]
  %v1145 = vld [vmem:[%s651 + $0xd0] sm:$0xff]
  %v1146 = vld [vmem:[%s651 + $0xe0] sm:$0xff]
  %v1147 = vld [vmem:[%s651 + $0xf0] sm:$0xff]
  %v1148 = vld [vmem:[%s651 + $0x100] sm:$0xff]
  %v1149 = vld [vmem:[%s651 + $0x110] sm:$0xff]
  %v1150 = vpack.c.bf16 %v1135, %v1134
  %v1151 = vpack.c.bf16 %v1137, %v1136
  %v1152 = vpack.c.bf16 %v1139, %v1138
  %v1153 = vpack.c.bf16 %v1141, %v1140
  %v1154 = vpack.c.bf16 %v1143, %v1142
  %v1155 = vpack.c.bf16 %v1145, %v1144
  %v1156 = vpack.c.bf16 %v1147, %v1146
  %v1157 = vpack.c.bf16 %v1149, %v1148
  %s1158 = scalar_lea.vmem %s4, 12
  %v1159 = vld [vmem:[%s1158] sm:$0xf]
  %v1161 = vsel %vm419, %v1150, 0
  %v1164 = vsel %vm419, %v1151, 0
  %v1167 = vsel %vm419, %v1152, 0
  %v1170 = vsel %vm419, %v1153, 0
  %v1173 = vsel %vm419, %v1154, 0
  %v1176 = vsel %vm419, %v1155, 0
  %v1179 = vsel %vm419, %v1156, 0
  %v1182 = vsel %vm419, %v1157, 0
  %v1185 = vsel %vm743, %v1159, 0
  %1187 = vmatprep.subr.bf16.mxu0 0
  %1188 = vmatpush1.bf16.msra.mxu0 %v1185
  %1189 = vmatprep.subr.bf16.mxu0 0
  %1190 = vmatpush1.bf16.msra.mxu0 0
  %1191 = vmatprep.subr.bf16.mxu0 0
  %1192 = vmatpush1.bf16.msra.mxu0 0
  %1193 = vmatprep.subr.bf16.mxu0 0
  %1194 = vmatpush1.bf16.msra.mxu0 0
  %1195 = vmatprep.subr.bf16.mxu0 0
  %1196 = vmatpush1.bf16.msra.mxu0 0
  %1197 = vmatprep.subr.bf16.mxu0 0
  %1198 = vmatpush1.bf16.msra.mxu0 0
  %1199 = vmatprep.subr.bf16.mxu0 0
  %1200 = vmatpush1.bf16.msra.mxu0 0
  %1201 = vmatprep.subr.bf16.mxu0 0
  %1202 = vmatpush1.bf16.msra.mxu0 0
  %1203 = vmatprep.subr.bf16.mxu0 0
  %1204 = vmatpush1.bf16.msra.mxu0 0
  %1205 = vmatprep.subr.bf16.mxu0 0
  %1206 = vmatpush1.bf16.msra.mxu0 0
  %1207 = vmatprep.subr.bf16.mxu0 0
  %1208 = vmatpush1.bf16.msra.mxu0 0
  %1209 = vmatprep.subr.bf16.mxu0 0
  %1210 = vmatpush1.bf16.msra.mxu0 0
  %1211 = vmatprep.subr.bf16.mxu0 0
  %1212 = vmatpush1.bf16.msra.mxu0 0
  %1213 = vmatprep.subr.bf16.mxu0 0
  %1214 = vmatpush1.bf16.msra.mxu0 0
  %1215 = vmatprep.subr.bf16.mxu0 0
  %1216 = vmatpush1.bf16.msra.mxu0 0
  %1217 = vmatprep.subr.bf16.mxu0 0
  %1218 = vmatpush1.bf16.msra.mxu0 0
  %1219 = vmatprep.mubr.bf16.mxu0 0
  %1220 = vmatmul.mubr.bf16.gmra.mrb[0].mxu0 %v1161
  %v1221 = vpop.f32.mrb[0].mxu0
  %v1222 = vadd.f32 0.0, %v1221
  %v1223 = vpop.f32.mrb[0].mxu0
  %v1224 = vpop.f32.mrb[0].mxu0
  %v1225 = vadd.f32 0.0, %v1224
  %v1226 = vpop.f32.mrb[0].mxu0
  %1227 = vmatprep.mubr.bf16.mxu0 0
  %1228 = vmatmul.mubr.bf16.gmra.mrb[0].mxu0 %v1164
  %v1229 = vpop.f32.mrb[0].mxu0
  %v1230 = vadd.f32 0.0, %v1229
  %v1231 = vpop.f32.mrb[0].mxu0
  %v1232 = vpop.f32.mrb[0].mxu0
  %v1233 = vadd.f32 0.0, %v1232
  %v1234 = vpop.f32.mrb[0].mxu0
  %1235 = vmatprep.mubr.bf16.mxu0 0
  %1236 = vmatmul.mubr.bf16.gmra.mrb[0].mxu0 %v1167
  %v1237 = vpop.f32.mrb[0].mxu0
  %v1238 = vadd.f32 0.0, %v1237
  %v1239 = vpop.f32.mrb[0].mxu0
  %v1240 = vpop.f32.mrb[0].mxu0
  %v1241 = vadd.f32 0.0, %v1240
  %v1242 = vpop.f32.mrb[0].mxu0
  %1243 = vmatprep.mubr.bf16.mxu0 0
  %1244 = vmatmul.mubr.bf16.gmra.mrb[0].mxu0 %v1170
  %v1245 = vpop.f32.mrb[0].mxu0
  %v1246 = vadd.f32 0.0, %v1245
  %v1247 = vpop.f32.mrb[0].mxu0
  %v1248 = vpop.f32.mrb[0].mxu0
  %v1249 = vadd.f32 0.0, %v1248
  %v1250 = vpop.f32.mrb[0].mxu0
  %1251 = vmatprep.mubr.bf16.mxu0 0
  %1252 = vmatmul.mubr.bf16.gmra.mrb[0].mxu0 %v1173
  %v1253 = vpop.f32.mrb[0].mxu0
  %v1254 = vadd.f32 0.0, %v1253
  %v1255 = vpop.f32.mrb[0].mxu0
  %v1256 = vpop.f32.mrb[0].mxu0
  %v1257 = vadd.f32 0.0, %v1256
  %v1258 = vpop.f32.mrb[0].mxu0
  %1259 = vmatprep.mubr.bf16.mxu0 0
  %1260 = vmatmul.mubr.bf16.gmra.mrb[0].mxu0 %v1176
  %v1261 = vpop.f32.mrb[0].mxu0
  %v1262 = vadd.f32 0.0, %v1261
  %v1263 = vpop.f32.mrb[0].mxu0
  %v1264 = vpop.f32.mrb[0].mxu0
  %v1265 = vadd.f32 0.0, %v1264
  %v1266 = vpop.f32.mrb[0].mxu0
  %1267 = vmatprep.mubr.bf16.mxu0 0
  %1268 = vmatmul.mubr.bf16.gmra.mrb[0].mxu0 %v1179
  %v1269 = vpop.f32.mrb[0].mxu0
  %v1270 = vadd.f32 0.0, %v1269
  %v1271 = vpop.f32.mrb[0].mxu0
  %v1272 = vpop.f32.mrb[0].mxu0
  %v1273 = vadd.f32 0.0, %v1272
  %v1274 = vpop.f32.mrb[0].mxu0
  %1275 = vmatprep.mubr.bf16.mxu0 0
  %1276 = vmatmul.mubr.bf16.gmra.mrb[0].mxu0 %v1182
  %v1277 = vpop.f32.mrb[0].mxu0
  %v1278 = vadd.f32 0.0, %v1277
  %v1279 = vpop.f32.mrb[0].mxu0
  %v1280 = vpop.f32.mrb[0].mxu0
  %v1281 = vadd.f32 0.0, %v1280
  %v1282 = vpop.f32.mrb[0].mxu0
  %1283 = vdwg.mxu0
  %v1284 = vadd.f32 %v1118, %v1222
  %v1285 = vadd.f32 %v1119, %v1225
  %v1286 = vadd.f32 %v1120, %v1230
  %v1287 = vadd.f32 %v1121, %v1233
  %v1288 = vadd.f32 %v1122, %v1238
  %v1289 = vadd.f32 %v1123, %v1241
  %v1290 = vadd.f32 %v1124, %v1246
  %v1291 = vadd.f32 %v1125, %v1249
  %v1292 = vadd.f32 %v1126, %v1254
  %v1293 = vadd.f32 %v1127, %v1257
  %v1294 = vadd.f32 %v1128, %v1262
  %v1295 = vadd.f32 %v1129, %v1265
  %v1296 = vadd.f32 %v1130, %v1270
  %v1297 = vadd.f32 %v1131, %v1273
  %v1298 = vadd.f32 %v1132, %v1278
  %v1299 = vadd.f32 %v1133, %v1281
  %v1300 = vld [vmem:[%s651 + $0x1] sm:$0xff]
  %v1301 = vld [vmem:[%s651 + $0x11] sm:$0xff]
  %v1302 = vld [vmem:[%s651 + $0x21] sm:$0xff]
  %v1303 = vld [vmem:[%s651 + $0x31] sm:$0xff]
  %v1304 = vld [vmem:[%s651 + $0x41] sm:$0xff]
  %v1305 = vld [vmem:[%s651 + $0x51] sm:$0xff]
  %v1306 = vld [vmem:[%s651 + $0x61] sm:$0xff]
  %v1307 = vld [vmem:[%s651 + $0x71] sm:$0xff]
  %v1308 = vld [vmem:[%s651 + $0xa1] sm:$0xff]
  %v1309 = vld [vmem:[%s651 + $0xb1] sm:$0xff]
  %v1310 = vld [vmem:[%s651 + $0xc1] sm:$0xff]
  %v1311 = vld [vmem:[%s651 + $0xd1] sm:$0xff]
  %v1312 = vld [vmem:[%s651 + $0xe1] sm:$0xff]
  %v1313 = vld [vmem:[%s651 + $0xf1] sm:$0xff]
  %v1314 = vld [vmem:[%s651 + $0x101] sm:$0xff]
  %v1315 = vld [vmem:[%s651 + $0x111] sm:$0xff]
  %v1316 = vpack.c.bf16 %v1301, %v1300
  %v1317 = vpack.c.bf16 %v1303, %v1302
  %v1318 = vpack.c.bf16 %v1305, %v1304
  %v1319 = vpack.c.bf16 %v1307, %v1306
  %v1320 = vpack.c.bf16 %v1309, %v1308
  %v1321 = vpack.c.bf16 %v1311, %v1310
  %v1322 = vpack.c.bf16 %v1313, %v1312
  %v1323 = vpack.c.bf16 %v1315, %v1314
  %s1324 = scalar_lea.vmem %s4, 16
  %v1325 = vld [vmem:[%s1324] sm:$0xf]
  %v1327 = vsel %vm419, %v1316, 0
  %v1330 = vsel %vm419, %v1317, 0
  %v1333 = vsel %vm419, %v1318, 0
  %v1336 = vsel %vm419, %v1319, 0
  %v1339 = vsel %vm419, %v1320, 0
  %v1342 = vsel %vm419, %v1321, 0
  %v1345 = vsel %vm419, %v1322, 0
  %v1348 = vsel %vm419, %v1323, 0
  %v1351 = vsel %vm743, %v1325, 0
  %1353 = vmatprep.subr.bf16.mxu0 0
  %1354 = vmatpush1.bf16.msra.mxu0 %v1351
  %1355 = vmatprep.subr.bf16.mxu0 0
  %1356 = vmatpush1.bf16.msra.mxu0 0
  %1357 = vmatprep.subr.bf16.mxu0 0
  %1358 = vmatpush1.bf16.msra.mxu0 0
  %1359 = vmatprep.subr.bf16.mxu0 0
  %1360 = vmatpush1.bf16.msra.mxu0 0
  %1361 = vmatprep.subr.bf16.mxu0 0
  %1362 = vmatpush1.bf16.msra.mxu0 0
  %1363 = vmatprep.subr.bf16.mxu0 0
  %1364 = vmatpush1.bf16.msra.mxu0 0
  %1365 = vmatprep.subr.bf16.mxu0 0
  %1366 = vmatpush1.bf16.msra.mxu0 0
  %1367 = vmatprep.subr.bf16.mxu0 0
  %1368 = vmatpush1.bf16.msra.mxu0 0
  %1369 = vmatprep.subr.bf16.mxu0 0
  %1370 = vmatpush1.bf16.msra.mxu0 0
  %1371 = vmatprep.subr.bf16.mxu0 0
  %1372 = vmatpush1.bf16.msra.mxu0 0
  %1373 = vmatprep.subr.bf16.mxu0 0
  %1374 = vmatpush1.bf16.msra.mxu0 0
  %1375 = vmatprep.subr.bf16.mxu0 0
  %1376 = vmatpush1.bf16.msra.mxu0 0
  %1377 = vmatprep.subr.bf16.mxu0 0
  %1378 = vmatpush1.bf16.msra.mxu0 0
  %1379 = vmatprep.subr.bf16.mxu0 0
  %1380 = vmatpush1.bf16.msra.mxu0 0
  %1381 = vmatprep.subr.bf16.mxu0 0
  %1382 = vmatpush1.bf16.msra.mxu0 0
  %1383 = vmatprep.subr.bf16.mxu0 0
  %1384 = vmatpush1.bf16.msra.mxu0 0
  %1385 = vmatprep.mubr.bf16.mxu0 0
  %1386 = vmatmul.mubr.bf16.gmra.mrb[0].mxu0 %v1327
  %v1387 = vpop.f32.mrb[0].mxu0
  %v1388 = vadd.f32 0.0, %v1387
  %v1389 = vpop.f32.mrb[0].mxu0
  %v1390 = vpop.f32.mrb[0].mxu0
  %v1391 = vadd.f32 0.0, %v1390
  %v1392 = vpop.f32.mrb[0].mxu0
  %1393 = vmatprep.mubr.bf16.mxu0 0
  %1394 = vmatmul.mubr.bf16.gmra.mrb[0].mxu0 %v1330
  %v1395 = vpop.f32.mrb[0].mxu0
  %v1396 = vadd.f32 0.0, %v1395
  %v1397 = vpop.f32.mrb[0].mxu0
  %v1398 = vpop.f32.mrb[0].mxu0
  %v1399 = vadd.f32 0.0, %v1398
  %v1400 = vpop.f32.mrb[0].mxu0
  %1401 = vmatprep.mubr.bf16.mxu0 0
  %1402 = vmatmul.mubr.bf16.gmra.mrb[0].mxu0 %v1333
  %v1403 = vpop.f32.mrb[0].mxu0
  %v1404 = vadd.f32 0.0, %v1403
  %v1405 = vpop.f32.mrb[0].mxu0
  %v1406 = vpop.f32.mrb[0].mxu0
  %v1407 = vadd.f32 0.0, %v1406
  %v1408 = vpop.f32.mrb[0].mxu0
  %1409 = vmatprep.mubr.bf16.mxu0 0
  %1410 = vmatmul.mubr.bf16.gmra.mrb[0].mxu0 %v1336
  %v1411 = vpop.f32.mrb[0].mxu0
  %v1412 = vadd.f32 0.0, %v1411
  %v1413 = vpop.f32.mrb[0].mxu0
  %v1414 = vpop.f32.mrb[0].mxu0
  %v1415 = vadd.f32 0.0, %v1414
  %v1416 = vpop.f32.mrb[0].mxu0
  %1417 = vmatprep.mubr.bf16.mxu0 0
  %1418 = vmatmul.mubr.bf16.gmra.mrb[0].mxu0 %v1339
  %v1419 = vpop.f32.mrb[0].mxu0
  %v1420 = vadd.f32 0.0, %v1419
  %v1421 = vpop.f32.mrb[0].mxu0
  %v1422 = vpop.f32.mrb[0].mxu0
  %v1423 = vadd.f32 0.0, %v1422
  %v1424 = vpop.f32.mrb[0].mxu0
  %1425 = vmatprep.mubr.bf16.mxu0 0
  %1426 = vmatmul.mubr.bf16.gmra.mrb[0].mxu0 %v1342
  %v1427 = vpop.f32.mrb[0].mxu0
  %v1428 = vadd.f32 0.0, %v1427
  %v1429 = vpop.f32.mrb[0].mxu0
  %v1430 = vpop.f32.mrb[0].mxu0
  %v1431 = vadd.f32 0.0, %v1430
  %v1432 = vpop.f32.mrb[0].mxu0
  %1433 = vmatprep.mubr.bf16.mxu0 0
  %1434 = vmatmul.mubr.bf16.gmra.mrb[0].mxu0 %v1345
  %v1435 = vpop.f32.mrb[0].mxu0
  %v1436 = vadd.f32 0.0, %v1435
  %v1437 = vpop.f32.mrb[0].mxu0
  %v1438 = vpop.f32.mrb[0].mxu0
  %v1439 = vadd.f32 0.0, %v1438
  %v1440 = vpop.f32.mrb[0].mxu0
  %1441 = vmatprep.mubr.bf16.mxu0 0
  %1442 = vmatmul.mubr.bf16.gmra.mrb[0].mxu0 %v1348
  %v1443 = vpop.f32.mrb[0].mxu0
  %v1444 = vadd.f32 0.0, %v1443
  %v1445 = vpop.f32.mrb[0].mxu0
  %v1446 = vpop.f32.mrb[0].mxu0
  %v1447 = vadd.f32 0.0, %v1446
  %v1448 = vpop.f32.mrb[0].mxu0
  %1449 = vdwg.mxu0
  %v1450 = vadd.f32 %v1284, %v1388
  %v1451 = vadd.f32 %v1285, %v1391
  %v1452 = vadd.f32 %v1286, %v1396
  %v1453 = vadd.f32 %v1287, %v1399
  %v1454 = vadd.f32 %v1288, %v1404
  %v1455 = vadd.f32 %v1289, %v1407
  %v1456 = vadd.f32 %v1290, %v1412
  %v1457 = vadd.f32 %v1291, %v1415
  %v1458 = vadd.f32 %v1292, %v1420
  %v1459 = vadd.f32 %v1293, %v1423
  %v1460 = vadd.f32 %v1294, %v1428
  %v1461 = vadd.f32 %v1295, %v1431
  %v1462 = vadd.f32 %v1296, %v1436
  %v1463 = vadd.f32 %v1297, %v1439
  %v1464 = vadd.f32 %v1298, %v1444
  %v1465 = vadd.f32 %v1299, %v1447
  %v1466 = vld [vmem:[%s651 + $0x2] sm:$0xff]
  %v1467 = vld [vmem:[%s651 + $0x12] sm:$0xff]
  %v1468 = vld [vmem:[%s651 + $0x22] sm:$0xff]
  %v1469 = vld [vmem:[%s651 + $0x32] sm:$0xff]
  %v1470 = vld [vmem:[%s651 + $0x42] sm:$0xff]
  %v1471 = vld [vmem:[%s651 + $0x52] sm:$0xff]
  %v1472 = vld [vmem:[%s651 + $0x62] sm:$0xff]
  %v1473 = vld [vmem:[%s651 + $0x72] sm:$0xff]
  %v1474 = vld [vmem:[%s651 + $0xa2] sm:$0xff]
  %v1475 = vld [vmem:[%s651 + $0xb2] sm:$0xff]
  %v1476 = vld [vmem:[%s651 + $0xc2] sm:$0xff]
  %v1477 = vld [vmem:[%s651 + $0xd2] sm:$0xff]
  %v1478 = vld [vmem:[%s651 + $0xe2] sm:$0xff]
  %v1479 = vld [vmem:[%s651 + $0xf2] sm:$0xff]
  %v1480 = vld [vmem:[%s651 + $0x102] sm:$0xff]
  %v1481 = vld [vmem:[%s651 + $0x112] sm:$0xff]
  %v1482 = vpack.c.bf16 %v1467, %v1466
  %v1483 = vpack.c.bf16 %v1469, %v1468
  %v1484 = vpack.c.bf16 %v1471, %v1470
  %v1485 = vpack.c.bf16 %v1473, %v1472
  %v1486 = vpack.c.bf16 %v1475, %v1474
  %v1487 = vpack.c.bf16 %v1477, %v1476
  %v1488 = vpack.c.bf16 %v1479, %v1478
  %v1489 = vpack.c.bf16 %v1481, %v1480
  %s1490 = scalar_lea.vmem %s4, 20
  %v1491 = vld [vmem:[%s1490] sm:$0xf]
  %v1493 = vsel %vm419, %v1482, 0
  %v1496 = vsel %vm419, %v1483, 0
  %v1499 = vsel %vm419, %v1484, 0
  %v1502 = vsel %vm419, %v1485, 0
  %v1505 = vsel %vm419, %v1486, 0
  %v1508 = vsel %vm419, %v1487, 0
  %v1511 = vsel %vm419, %v1488, 0
  %v1514 = vsel %vm419, %v1489, 0
  %v1517 = vsel %vm743, %v1491, 0
  %1519 = vmatprep.subr.bf16.mxu0 0
  %1520 = vmatpush1.bf16.msra.mxu0 %v1517
  %1521 = vmatprep.subr.bf16.mxu0 0
  %1522 = vmatpush1.bf16.msra.mxu0 0
  %1523 = vmatprep.subr.bf16.mxu0 0
  %1524 = vmatpush1.bf16.msra.mxu0 0
  %1525 = vmatprep.subr.bf16.mxu0 0
  %1526 = vmatpush1.bf16.msra.mxu0 0
  %1527 = vmatprep.subr.bf16.mxu0 0
  %1528 = vmatpush1.bf16.msra.mxu0 0
  %1529 = vmatprep.subr.bf16.mxu0 0
  %1530 = vmatpush1.bf16.msra.mxu0 0
  %1531 = vmatprep.subr.bf16.mxu0 0
  %1532 = vmatpush1.bf16.msra.mxu0 0
  %1533 = vmatprep.subr.bf16.mxu0 0
  %1534 = vmatpush1.bf16.msra.mxu0 0
  %1535 = vmatprep.subr.bf16.mxu0 0
  %1536 = vmatpush1.bf16.msra.mxu0 0
  %1537 = vmatprep.subr.bf16.mxu0 0
  %1538 = vmatpush1.bf16.msra.mxu0 0
  %1539 = vmatprep.subr.bf16.mxu0 0
  %1540 = vmatpush1.bf16.msra.mxu0 0
  %1541 = vmatprep.subr.bf16.mxu0 0
  %1542 = vmatpush1.bf16.msra.mxu0 0
  %1543 = vmatprep.subr.bf16.mxu0 0
  %1544 = vmatpush1.bf16.msra.mxu0 0
  %1545 = vmatprep.subr.bf16.mxu0 0
  %1546 = vmatpush1.bf16.msra.mxu0 0
  %1547 = vmatprep.subr.bf16.mxu0 0
  %1548 = vmatpush1.bf16.msra.mxu0 0
  %1549 = vmatprep.subr.bf16.mxu0 0
  %1550 = vmatpush1.bf16.msra.mxu0 0
  %1551 = vmatprep.mubr.bf16.mxu0 0
  %1552 = vmatmul.mubr.bf16.gmra.mrb[0].mxu0 %v1493
  %v1553 = vpop.f32.mrb[0].mxu0
  %v1554 = vadd.f32 0.0, %v1553
  %v1555 = vpop.f32.mrb[0].mxu0
  %v1556 = vpop.f32.mrb[0].mxu0
  %v1557 = vadd.f32 0.0, %v1556
  %v1558 = vpop.f32.mrb[0].mxu0
  %1559 = vmatprep.mubr.bf16.mxu0 0
  %1560 = vmatmul.mubr.bf16.gmra.mrb[0].mxu0 %v1496
  %v1561 = vpop.f32.mrb[0].mxu0
  %v1562 = vadd.f32 0.0, %v1561
  %v1563 = vpop.f32.mrb[0].mxu0
  %v1564 = vpop.f32.mrb[0].mxu0
  %v1565 = vadd.f32 0.0, %v1564
  %v1566 = vpop.f32.mrb[0].mxu0
  %1567 = vmatprep.mubr.bf16.mxu0 0
  %1568 = vmatmul.mubr.bf16.gmra.mrb[0].mxu0 %v1499
  %v1569 = vpop.f32.mrb[0].mxu0
  %v1570 = vadd.f32 0.0, %v1569
  %v1571 = vpop.f32.mrb[0].mxu0
  %v1572 = vpop.f32.mrb[0].mxu0
  %v1573 = vadd.f32 0.0, %v1572
  %v1574 = vpop.f32.mrb[0].mxu0
  %1575 = vmatprep.mubr.bf16.mxu0 0
  %1576 = vmatmul.mubr.bf16.gmra.mrb[0].mxu0 %v1502
  %v1577 = vpop.f32.mrb[0].mxu0
  %v1578 = vadd.f32 0.0, %v1577
  %v1579 = vpop.f32.mrb[0].mxu0
  %v1580 = vpop.f32.mrb[0].mxu0
  %v1581 = vadd.f32 0.0, %v1580
  %v1582 = vpop.f32.mrb[0].mxu0
  %1583 = vmatprep.mubr.bf16.mxu0 0
  %1584 = vmatmul.mubr.bf16.gmra.mrb[0].mxu0 %v1505
  %v1585 = vpop.f32.mrb[0].mxu0
  %v1586 = vadd.f32 0.0, %v1585
  %v1587 = vpop.f32.mrb[0].mxu0
  %v1588 = vpop.f32.mrb[0].mxu0
  %v1589 = vadd.f32 0.0, %v1588
  %v1590 = vpop.f32.mrb[0].mxu0
  %1591 = vmatprep.mubr.bf16.mxu0 0
  %1592 = vmatmul.mubr.bf16.gmra.mrb[0].mxu0 %v1508
  %v1593 = vpop.f32.mrb[0].mxu0
  %v1594 = vadd.f32 0.0, %v1593
  %v1595 = vpop.f32.mrb[0].mxu0
  %v1596 = vpop.f32.mrb[0].mxu0
  %v1597 = vadd.f32 0.0, %v1596
  %v1598 = vpop.f32.mrb[0].mxu0
  %1599 = vmatprep.mubr.bf16.mxu0 0
  %1600 = vmatmul.mubr.bf16.gmra.mrb[0].mxu0 %v1511
  %v1601 = vpop.f32.mrb[0].mxu0
  %v1602 = vadd.f32 0.0, %v1601
  %v1603 = vpop.f32.mrb[0].mxu0
  %v1604 = vpop.f32.mrb[0].mxu0
  %v1605 = vadd.f32 0.0, %v1604
  %v1606 = vpop.f32.mrb[0].mxu0
  %1607 = vmatprep.mubr.bf16.mxu0 0
  %1608 = vmatmul.mubr.bf16.gmra.mrb[0].mxu0 %v1514
  %v1609 = vpop.f32.mrb[0].mxu0
  %v1610 = vadd.f32 0.0, %v1609
  %v1611 = vpop.f32.mrb[0].mxu0
  %v1612 = vpop.f32.mrb[0].mxu0
  %v1613 = vadd.f32 0.0, %v1612
  %v1614 = vpop.f32.mrb[0].mxu0
  %1615 = vdwg.mxu0
  %v1616 = vadd.f32 %v1450, %v1554
  %v1617 = vadd.f32 %v1451, %v1557
  %v1618 = vadd.f32 %v1452, %v1562
  %v1619 = vadd.f32 %v1453, %v1565
  %v1620 = vadd.f32 %v1454, %v1570
  %v1621 = vadd.f32 %v1455, %v1573
  %v1622 = vadd.f32 %v1456, %v1578
  %v1623 = vadd.f32 %v1457, %v1581
  %v1624 = vadd.f32 %v1458, %v1586
  %v1625 = vadd.f32 %v1459, %v1589
  %v1626 = vadd.f32 %v1460, %v1594
  %v1627 = vadd.f32 %v1461, %v1597
  %v1628 = vadd.f32 %v1462, %v1602
  %v1629 = vadd.f32 %v1463, %v1605
  %v1630 = vadd.f32 %v1464, %v1610
  %v1631 = vadd.f32 %v1465, %v1613
  %s1632 = scalar_lea.vmem [#allocation2], 32
  %v1633 = vld [vmem:[%s1632] sm:$0xff]
  %v1634 = vld [vmem:[%s1632 + $0x10] sm:$0xff]
  %v1635 = vld [vmem:[%s1632 + $0x20] sm:$0xff]
  %v1636 = vld [vmem:[%s1632 + $0x30] sm:$0xff]
  %v1637 = vld [vmem:[%s1632 + $0x40] sm:$0xff]
  %v1638 = vld [vmem:[%s1632 + $0x50] sm:$0xff]
  %v1639 = vld [vmem:[%s1632 + $0x60] sm:$0xff]
  %v1640 = vld [vmem:[%s1632 + $0x70] sm:$0xff]
  %v1641 = vld [vmem:[%s1632 + $0xa0] sm:$0xff]
  %v1642 = vld [vmem:[%s1632 + $0xb0] sm:$0xff]
  %v1643 = vld [vmem:[%s1632 + $0xc0] sm:$0xff]
  %v1644 = vld [vmem:[%s1632 + $0xd0] sm:$0xff]
  %v1645 = vld [vmem:[%s1632 + $0xe0] sm:$0xff]
  %v1646 = vld [vmem:[%s1632 + $0xf0] sm:$0xff]
  %v1647 = vld [vmem:[%s1632 + $0x100] sm:$0xff]
  %v1648 = vld [vmem:[%s1632 + $0x110] sm:$0xff]
  %v1649 = vpack.c.bf16 %v1634, %v1633
  %v1650 = vpack.c.bf16 %v1636, %v1635
  %v1651 = vpack.c.bf16 %v1638, %v1637
  %v1652 = vpack.c.bf16 %v1640, %v1639
  %v1653 = vpack.c.bf16 %v1642, %v1641
  %v1654 = vpack.c.bf16 %v1644, %v1643
  %v1655 = vpack.c.bf16 %v1646, %v1645
  %v1656 = vpack.c.bf16 %v1648, %v1647
  %s1657 = scalar_lea.vmem %s4, 24
  %v1658 = vld [vmem:[%s1657] sm:$0xf]
  %v1660 = vsel %vm419, %v1649, 0
  %v1663 = vsel %vm419, %v1650, 0
  %v1666 = vsel %vm419, %v1651, 0
  %v1669 = vsel %vm419, %v1652, 0
  %v1672 = vsel %vm419, %v1653, 0
  %v1675 = vsel %vm419, %v1654, 0
  %v1678 = vsel %vm419, %v1655, 0
  %v1681 = vsel %vm419, %v1656, 0
  %v1684 = vsel %vm743, %v1658, 0
  %1686 = vmatprep.subr.bf16.mxu0 0
  %1687 = vmatpush1.bf16.msra.mxu0 %v1684
  %1688 = vmatprep.subr.bf16.mxu0 0
  %1689 = vmatpush1.bf16.msra.mxu0 0
  %1690 = vmatprep.subr.bf16.mxu0 0
  %1691 = vmatpush1.bf16.msra.mxu0 0
  %1692 = vmatprep.subr.bf16.mxu0 0
  %1693 = vmatpush1.bf16.msra.mxu0 0
  %1694 = vmatprep.subr.bf16.mxu0 0
  %1695 = vmatpush1.bf16.msra.mxu0 0
  %1696 = vmatprep.subr.bf16.mxu0 0
  %1697 = vmatpush1.bf16.msra.mxu0 0
  %1698 = vmatprep.subr.bf16.mxu0 0
  %1699 = vmatpush1.bf16.msra.mxu0 0
  %1700 = vmatprep.subr.bf16.mxu0 0
  %1701 = vmatpush1.bf16.msra.mxu0 0
  %1702 = vmatprep.subr.bf16.mxu0 0
  %1703 = vmatpush1.bf16.msra.mxu0 0
  %1704 = vmatprep.subr.bf16.mxu0 0
  %1705 = vmatpush1.bf16.msra.mxu0 0
  %1706 = vmatprep.subr.bf16.mxu0 0
  %1707 = vmatpush1.bf16.msra.mxu0 0
  %1708 = vmatprep.subr.bf16.mxu0 0
  %1709 = vmatpush1.bf16.msra.mxu0 0
  %1710 = vmatprep.subr.bf16.mxu0 0
  %1711 = vmatpush1.bf16.msra.mxu0 0
  %1712 = vmatprep.subr.bf16.mxu0 0
  %1713 = vmatpush1.bf16.msra.mxu0 0
  %1714 = vmatprep.subr.bf16.mxu0 0
  %1715 = vmatpush1.bf16.msra.mxu0 0
  %1716 = vmatprep.subr.bf16.mxu0 0
  %1717 = vmatpush1.bf16.msra.mxu0 0
  %1718 = vmatprep.mubr.bf16.mxu0 0
  %1719 = vmatmul.mubr.bf16.gmra.mrb[0].mxu0 %v1660
  %v1720 = vpop.f32.mrb[0].mxu0
  %v1721 = vadd.f32 0.0, %v1720
  %v1722 = vpop.f32.mrb[0].mxu0
  %v1723 = vpop.f32.mrb[0].mxu0
  %v1724 = vadd.f32 0.0, %v1723
  %v1725 = vpop.f32.mrb[0].mxu0
  %1726 = vmatprep.mubr.bf16.mxu0 0
  %1727 = vmatmul.mubr.bf16.gmra.mrb[0].mxu0 %v1663
  %v1728 = vpop.f32.mrb[0].mxu0
  %v1729 = vadd.f32 0.0, %v1728
  %v1730 = vpop.f32.mrb[0].mxu0
  %v1731 = vpop.f32.mrb[0].mxu0
  %v1732 = vadd.f32 0.0, %v1731
  %v1733 = vpop.f32.mrb[0].mxu0
  %1734 = vmatprep.mubr.bf16.mxu0 0
  %1735 = vmatmul.mubr.bf16.gmra.mrb[0].mxu0 %v1666
  %v1736 = vpop.f32.mrb[0].mxu0
  %v1737 = vadd.f32 0.0, %v1736
  %v1738 = vpop.f32.mrb[0].mxu0
  %v1739 = vpop.f32.mrb[0].mxu0
  %v1740 = vadd.f32 0.0, %v1739
  %v1741 = vpop.f32.mrb[0].mxu0
  %1742 = vmatprep.mubr.bf16.mxu0 0
  %1743 = vmatmul.mubr.bf16.gmra.mrb[0].mxu0 %v1669
  %v1744 = vpop.f32.mrb[0].mxu0
  %v1745 = vadd.f32 0.0, %v1744
  %v1746 = vpop.f32.mrb[0].mxu0
  %v1747 = vpop.f32.mrb[0].mxu0
  %v1748 = vadd.f32 0.0, %v1747
  %v1749 = vpop.f32.mrb[0].mxu0
  %1750 = vmatprep.mubr.bf16.mxu0 0
  %1751 = vmatmul.mubr.bf16.gmra.mrb[0].mxu0 %v1672
  %v1752 = vpop.f32.mrb[0].mxu0
  %v1753 = vadd.f32 0.0, %v1752
  %v1754 = vpop.f32.mrb[0].mxu0
  %v1755 = vpop.f32.mrb[0].mxu0
  %v1756 = vadd.f32 0.0, %v1755
  %v1757 = vpop.f32.mrb[0].mxu0
  %1758 = vmatprep.mubr.bf16.mxu0 0
  %1759 = vmatmul.mubr.bf16.gmra.mrb[0].mxu0 %v1675
  %v1760 = vpop.f32.mrb[0].mxu0
  %v1761 = vadd.f32 0.0, %v1760
  %v1762 = vpop.f32.mrb[0].mxu0
  %v1763 = vpop.f32.mrb[0].mxu0
  %v1764 = vadd.f32 0.0, %v1763
  %v1765 = vpop.f32.mrb[0].mxu0
  %1766 = vmatprep.mubr.bf16.mxu0 0
  %1767 = vmatmul.mubr.bf16.gmra.mrb[0].mxu0 %v1678
  %v1768 = vpop.f32.mrb[0].mxu0
  %v1769 = vadd.f32 0.0, %v1768
  %v1770 = vpop.f32.mrb[0].mxu0
  %v1771 = vpop.f32.mrb[0].mxu0
  %v1772 = vadd.f32 0.0, %v1771
  %v1773 = vpop.f32.mrb[0].mxu0
  %1774 = vmatprep.mubr.bf16.mxu0 0
  %1775 = vmatmul.mubr.bf16.gmra.mrb[0].mxu0 %v1681
  %v1776 = vpop.f32.mrb[0].mxu0
  %v1777 = vadd.f32 0.0, %v1776
  %v1778 = vpop.f32.mrb[0].mxu0
  %v1779 = vpop.f32.mrb[0].mxu0
  %v1780 = vadd.f32 0.0, %v1779
  %v1781 = vpop.f32.mrb[0].mxu0
  %1782 = vdwg.mxu0
  %v1783 = vadd.f32 %v1616, %v1721
  %v1784 = vadd.f32 %v1617, %v1724
  %v1785 = vadd.f32 %v1618, %v1729
  %v1786 = vadd.f32 %v1619, %v1732
  %v1787 = vadd.f32 %v1620, %v1737
  %v1788 = vadd.f32 %v1621, %v1740
  %v1789 = vadd.f32 %v1622, %v1745
  %v1790 = vadd.f32 %v1623, %v1748
  %v1791 = vadd.f32 %v1624, %v1753
  %v1792 = vadd.f32 %v1625, %v1756
  %v1793 = vadd.f32 %v1626, %v1761
  %v1794 = vadd.f32 %v1627, %v1764
  %v1795 = vadd.f32 %v1628, %v1769
  %v1796 = vadd.f32 %v1629, %v1772
  %v1797 = vadd.f32 %v1630, %v1777
  %v1798 = vadd.f32 %v1631, %v1780
  %v1799 = vld [vmem:[%s1632 + $0x1] sm:$0xff]
  %v1800 = vld [vmem:[%s1632 + $0x11] sm:$0xff]
  %v1801 = vld [vmem:[%s1632 + $0x21] sm:$0xff]
  %v1802 = vld [vmem:[%s1632 + $0x31] sm:$0xff]
  %v1803 = vld [vmem:[%s1632 + $0x41] sm:$0xff]
  %v1804 = vld [vmem:[%s1632 + $0x51] sm:$0xff]
  %v1805 = vld [vmem:[%s1632 + $0x61] sm:$0xff]
  %v1806 = vld [vmem:[%s1632 + $0x71] sm:$0xff]
  %v1807 = vld [vmem:[%s1632 + $0xa1] sm:$0xff]
  %v1808 = vld [vmem:[%s1632 + $0xb1] sm:$0xff]
  %v1809 = vld [vmem:[%s1632 + $0xc1] sm:$0xff]
  %v1810 = vld [vmem:[%s1632 + $0xd1] sm:$0xff]
  %v1811 = vld [vmem:[%s1632 + $0xe1] sm:$0xff]
  %v1812 = vld [vmem:[%s1632 + $0xf1] sm:$0xff]
  %v1813 = vld [vmem:[%s1632 + $0x101] sm:$0xff]
  %v1814 = vld [vmem:[%s1632 + $0x111] sm:$0xff]
  %v1815 = vpack.c.bf16 %v1800, %v1799
  %v1816 = vpack.c.bf16 %v1802, %v1801
  %v1817 = vpack.c.bf16 %v1804, %v1803
  %v1818 = vpack.c.bf16 %v1806, %v1805
  %v1819 = vpack.c.bf16 %v1808, %v1807
  %v1820 = vpack.c.bf16 %v1810, %v1809
  %v1821 = vpack.c.bf16 %v1812, %v1811
  %v1822 = vpack.c.bf16 %v1814, %v1813
  %s1823 = scalar_lea.vmem %s4, 28
  %v1824 = vld [vmem:[%s1823] sm:$0xf]
  %v1826 = vsel %vm419, %v1815, 0
  %v1829 = vsel %vm419, %v1816, 0
  %v1832 = vsel %vm419, %v1817, 0
  %v1835 = vsel %vm419, %v1818, 0
  %v1838 = vsel %vm419, %v1819, 0
  %v1841 = vsel %vm419, %v1820, 0
  %v1844 = vsel %vm419, %v1821, 0
  %v1847 = vsel %vm419, %v1822, 0
  %v1850 = vsel %vm743, %v1824, 0
  %1852 = vmatprep.subr.bf16.mxu0 0
  %1853 = vmatpush1.bf16.msra.mxu0 %v1850
  %1854 = vmatprep.subr.bf16.mxu0 0
  %1855 = vmatpush1.bf16.msra.mxu0 0
  %1856 = vmatprep.subr.bf16.mxu0 0
  %1857 = vmatpush1.bf16.msra.mxu0 0
  %1858 = vmatprep.subr.bf16.mxu0 0
  %1859 = vmatpush1.bf16.msra.mxu0 0
  %1860 = vmatprep.subr.bf16.mxu0 0
  %1861 = vmatpush1.bf16.msra.mxu0 0
  %1862 = vmatprep.subr.bf16.mxu0 0
  %1863 = vmatpush1.bf16.msra.mxu0 0
  %1864 = vmatprep.subr.bf16.mxu0 0
  %1865 = vmatpush1.bf16.msra.mxu0 0
  %1866 = vmatprep.subr.bf16.mxu0 0
  %1867 = vmatpush1.bf16.msra.mxu0 0
  %1868 = vmatprep.subr.bf16.mxu0 0
  %1869 = vmatpush1.bf16.msra.mxu0 0
  %1870 = vmatprep.subr.bf16.mxu0 0
  %1871 = vmatpush1.bf16.msra.mxu0 0
  %1872 = vmatprep.subr.bf16.mxu0 0
  %1873 = vmatpush1.bf16.msra.mxu0 0
  %1874 = vmatprep.subr.bf16.mxu0 0
  %1875 = vmatpush1.bf16.msra.mxu0 0
  %1876 = vmatprep.subr.bf16.mxu0 0
  %1877 = vmatpush1.bf16.msra.mxu0 0
  %1878 = vmatprep.subr.bf16.mxu0 0
  %1879 = vmatpush1.bf16.msra.mxu0 0
  %1880 = vmatprep.subr.bf16.mxu0 0
  %1881 = vmatpush1.bf16.msra.mxu0 0
  %1882 = vmatprep.subr.bf16.mxu0 0
  %1883 = vmatpush1.bf16.msra.mxu0 0
  %1884 = vmatprep.mubr.bf16.mxu0 0
  %1885 = vmatmul.mubr.bf16.gmra.mrb[0].mxu0 %v1826
  %v1886 = vpop.f32.mrb[0].mxu0
  %v1887 = vadd.f32 0.0, %v1886
  %v1888 = vpop.f32.mrb[0].mxu0
  %v1889 = vpop.f32.mrb[0].mxu0
  %v1890 = vadd.f32 0.0, %v1889
  %v1891 = vpop.f32.mrb[0].mxu0
  %1892 = vmatprep.mubr.bf16.mxu0 0
  %1893 = vmatmul.mubr.bf16.gmra.mrb[0].mxu0 %v1829
  %v1894 = vpop.f32.mrb[0].mxu0
  %v1895 = vadd.f32 0.0, %v1894
  %v1896 = vpop.f32.mrb[0].mxu0
  %v1897 = vpop.f32.mrb[0].mxu0
  %v1898 = vadd.f32 0.0, %v1897
  %v1899 = vpop.f32.mrb[0].mxu0
  %1900 = vmatprep.mubr.bf16.mxu0 0
  %1901 = vmatmul.mubr.bf16.gmra.mrb[0].mxu0 %v1832
  %v1902 = vpop.f32.mrb[0].mxu0
  %v1903 = vadd.f32 0.0, %v1902
  %v1904 = vpop.f32.mrb[0].mxu0
  %v1905 = vpop.f32.mrb[0].mxu0
  %v1906 = vadd.f32 0.0, %v1905
  %v1907 = vpop.f32.mrb[0].mxu0
  %1908 = vmatprep.mubr.bf16.mxu0 0
  %1909 = vmatmul.mubr.bf16.gmra.mrb[0].mxu0 %v1835
  %v1910 = vpop.f32.mrb[0].mxu0
  %v1911 = vadd.f32 0.0, %v1910
  %v1912 = vpop.f32.mrb[0].mxu0
  %v1913 = vpop.f32.mrb[0].mxu0
  %v1914 = vadd.f32 0.0, %v1913
  %v1915 = vpop.f32.mrb[0].mxu0
  %1916 = vmatprep.mubr.bf16.mxu0 0
  %1917 = vmatmul.mubr.bf16.gmra.mrb[0].mxu0 %v1838
  %v1918 = vpop.f32.mrb[0].mxu0
  %v1919 = vadd.f32 0.0, %v1918
  %v1920 = vpop.f32.mrb[0].mxu0
  %v1921 = vpop.f32.mrb[0].mxu0
  %v1922 = vadd.f32 0.0, %v1921
  %v1923 = vpop.f32.mrb[0].mxu0
  %1924 = vmatprep.mubr.bf16.mxu0 0
  %1925 = vmatmul.mubr.bf16.gmra.mrb[0].mxu0 %v1841
  %v1926 = vpop.f32.mrb[0].mxu0
  %v1927 = vadd.f32 0.0, %v1926
  %v1928 = vpop.f32.mrb[0].mxu0
  %v1929 = vpop.f32.mrb[0].mxu0
  %v1930 = vadd.f32 0.0, %v1929
  %v1931 = vpop.f32.mrb[0].mxu0
  %1932 = vmatprep.mubr.bf16.mxu0 0
  %1933 = vmatmul.mubr.bf16.gmra.mrb[0].mxu0 %v1844
  %v1934 = vpop.f32.mrb[0].mxu0
  %v1935 = vadd.f32 0.0, %v1934
  %v1936 = vpop.f32.mrb[0].mxu0
  %v1937 = vpop.f32.mrb[0].mxu0
  %v1938 = vadd.f32 0.0, %v1937
  %v1939 = vpop.f32.mrb[0].mxu0
  %1940 = vmatprep.mubr.bf16.mxu0 0
  %1941 = vmatmul.mubr.bf16.gmra.mrb[0].mxu0 %v1847
  %v1942 = vpop.f32.mrb[0].mxu0
  %v1943 = vadd.f32 0.0, %v1942
  %v1944 = vpop.f32.mrb[0].mxu0
  %v1945 = vpop.f32.mrb[0].mxu0
  %v1946 = vadd.f32 0.0, %v1945
  %v1947 = vpop.f32.mrb[0].mxu0
  %1948 = vdwg.mxu0
  %v1949 = vadd.f32 %v1783, %v1887
  %v1950 = vadd.f32 %v1784, %v1890
  %v1951 = vadd.f32 %v1785, %v1895
  %v1952 = vadd.f32 %v1786, %v1898
  %v1953 = vadd.f32 %v1787, %v1903
  %v1954 = vadd.f32 %v1788, %v1906
  %v1955 = vadd.f32 %v1789, %v1911
  %v1956 = vadd.f32 %v1790, %v1914
  %v1957 = vadd.f32 %v1791, %v1919
  %v1958 = vadd.f32 %v1792, %v1922
  %v1959 = vadd.f32 %v1793, %v1927
  %v1960 = vadd.f32 %v1794, %v1930
  %v1961 = vadd.f32 %v1795, %v1935
  %v1962 = vadd.f32 %v1796, %v1938
  %v1963 = vadd.f32 %v1797, %v1943
  %v1964 = vadd.f32 %v1798, %v1946
  %v1965 = vld [vmem:[%s1632 + $0x2] sm:$0xff]
  %v1966 = vld [vmem:[%s1632 + $0x12] sm:$0xff]
  %v1967 = vld [vmem:[%s1632 + $0x22] sm:$0xff]
  %v1968 = vld [vmem:[%s1632 + $0x32] sm:$0xff]
  %v1969 = vld [vmem:[%s1632 + $0x42] sm:$0xff]
  %v1970 = vld [vmem:[%s1632 + $0x52] sm:$0xff]
  %v1971 = vld [vmem:[%s1632 + $0x62] sm:$0xff]
  %v1972 = vld [vmem:[%s1632 + $0x72] sm:$0xff]
  %v1973 = vld [vmem:[%s1632 + $0xa2] sm:$0xff]
  %v1974 = vld [vmem:[%s1632 + $0xb2] sm:$0xff]
  %v1975 = vld [vmem:[%s1632 + $0xc2] sm:$0xff]
  %v1976 = vld [vmem:[%s1632 + $0xd2] sm:$0xff]
  %v1977 = vld [vmem:[%s1632 + $0xe2] sm:$0xff]
  %v1978 = vld [vmem:[%s1632 + $0xf2] sm:$0xff]
  %v1979 = vld [vmem:[%s1632 + $0x102] sm:$0xff]
  %v1980 = vld [vmem:[%s1632 + $0x112] sm:$0xff]
  %v1981 = vpack.c.bf16 %v1966, %v1965
  %v1982 = vpack.c.bf16 %v1968, %v1967
  %v1983 = vpack.c.bf16 %v1970, %v1969
  %v1984 = vpack.c.bf16 %v1972, %v1971
  %v1985 = vpack.c.bf16 %v1974, %v1973
  %v1986 = vpack.c.bf16 %v1976, %v1975
  %v1987 = vpack.c.bf16 %v1978, %v1977
  %v1988 = vpack.c.bf16 %v1980, %v1979
  %s1989 = scalar_lea.vmem %s4, 32
  %v1990 = vld [vmem:[%s1989] sm:$0xf]
  %v1992 = vsel %vm419, %v1981, 0
  %v1995 = vsel %vm419, %v1982, 0
  %v1998 = vsel %vm419, %v1983, 0
  %v2001 = vsel %vm419, %v1984, 0
  %v2004 = vsel %vm419, %v1985, 0
  %v2007 = vsel %vm419, %v1986, 0
  %v2010 = vsel %vm419, %v1987, 0
  %v2013 = vsel %vm419, %v1988, 0
  %v2016 = vsel %vm743, %v1990, 0
  %2018 = vmatprep.subr.bf16.mxu0 0
  %2019 = vmatpush1.bf16.msra.mxu0 %v2016
  %2020 = vmatprep.subr.bf16.mxu0 0
  %2021 = vmatpush1.bf16.msra.mxu0 0
  %2022 = vmatprep.subr.bf16.mxu0 0
  %2023 = vmatpush1.bf16.msra.mxu0 0
  %2024 = vmatprep.subr.bf16.mxu0 0
  %2025 = vmatpush1.bf16.msra.mxu0 0
  %2026 = vmatprep.subr.bf16.mxu0 0
  %2027 = vmatpush1.bf16.msra.mxu0 0
  %2028 = vmatprep.subr.bf16.mxu0 0
  %2029 = vmatpush1.bf16.msra.mxu0 0
  %2030 = vmatprep.subr.bf16.mxu0 0
  %2031 = vmatpush1.bf16.msra.mxu0 0
  %2032 = vmatprep.subr.bf16.mxu0 0
  %2033 = vmatpush1.bf16.msra.mxu0 0
  %2034 = vmatprep.subr.bf16.mxu0 0
  %2035 = vmatpush1.bf16.msra.mxu0 0
  %2036 = vmatprep.subr.bf16.mxu0 0
  %2037 = vmatpush1.bf16.msra.mxu0 0
  %2038 = vmatprep.subr.bf16.mxu0 0
  %2039 = vmatpush1.bf16.msra.mxu0 0
  %2040 = vmatprep.subr.bf16.mxu0 0
  %2041 = vmatpush1.bf16.msra.mxu0 0
  %2042 = vmatprep.subr.bf16.mxu0 0
  %2043 = vmatpush1.bf16.msra.mxu0 0
  %2044 = vmatprep.subr.bf16.mxu0 0
  %2045 = vmatpush1.bf16.msra.mxu0 0
  %2046 = vmatprep.subr.bf16.mxu0 0
  %2047 = vmatpush1.bf16.msra.mxu0 0
  %2048 = vmatprep.subr.bf16.mxu0 0
  %2049 = vmatpush1.bf16.msra.mxu0 0
  %2050 = vmatprep.mubr.bf16.mxu0 0
  %2051 = vmatmul.mubr.bf16.gmra.mrb[0].mxu0 %v1992
  %v2052 = vpop.f32.mrb[0].mxu0
  %v2053 = vadd.f32 0.0, %v2052
  %v2054 = vpop.f32.mrb[0].mxu0
  %v2055 = vpop.f32.mrb[0].mxu0
  %v2056 = vadd.f32 0.0, %v2055
  %v2057 = vpop.f32.mrb[0].mxu0
  %2058 = vmatprep.mubr.bf16.mxu0 0
  %2059 = vmatmul.mubr.bf16.gmra.mrb[0].mxu0 %v1995
  %v2060 = vpop.f32.mrb[0].mxu0
  %v2061 = vadd.f32 0.0, %v2060
  %v2062 = vpop.f32.mrb[0].mxu0
  %v2063 = vpop.f32.mrb[0].mxu0
  %v2064 = vadd.f32 0.0, %v2063
  %v2065 = vpop.f32.mrb[0].mxu0
  %2066 = vmatprep.mubr.bf16.mxu0 0
  %2067 = vmatmul.mubr.bf16.gmra.mrb[0].mxu0 %v1998
  %v2068 = vpop.f32.mrb[0].mxu0
  %v2069 = vadd.f32 0.0, %v2068
  %v2070 = vpop.f32.mrb[0].mxu0
  %v2071 = vpop.f32.mrb[0].mxu0
  %v2072 = vadd.f32 0.0, %v2071
  %v2073 = vpop.f32.mrb[0].mxu0
  %2074 = vmatprep.mubr.bf16.mxu0 0
  %2075 = vmatmul.mubr.bf16.gmra.mrb[0].mxu0 %v2001
  %v2076 = vpop.f32.mrb[0].mxu0
  %v2077 = vadd.f32 0.0, %v2076
  %v2078 = vpop.f32.mrb[0].mxu0
  %v2079 = vpop.f32.mrb[0].mxu0
  %v2080 = vadd.f32 0.0, %v2079
  %v2081 = vpop.f32.mrb[0].mxu0
  %2082 = vmatprep.mubr.bf16.mxu0 0
  %2083 = vmatmul.mubr.bf16.gmra.mrb[0].mxu0 %v2004
  %v2084 = vpop.f32.mrb[0].mxu0
  %v2085 = vadd.f32 0.0, %v2084
  %v2086 = vpop.f32.mrb[0].mxu0
  %v2087 = vpop.f32.mrb[0].mxu0
  %v2088 = vadd.f32 0.0, %v2087
  %v2089 = vpop.f32.mrb[0].mxu0
  %2090 = vmatprep.mubr.bf16.mxu0 0
  %2091 = vmatmul.mubr.bf16.gmra.mrb[0].mxu0 %v2007
  %v2092 = vpop.f32.mrb[0].mxu0
  %v2093 = vadd.f32 0.0, %v2092
  %v2094 = vpop.f32.mrb[0].mxu0
  %v2095 = vpop.f32.mrb[0].mxu0
  %v2096 = vadd.f32 0.0, %v2095
  %v2097 = vpop.f32.mrb[0].mxu0
  %2098 = vmatprep.mubr.bf16.mxu0 0
  %2099 = vmatmul.mubr.bf16.gmra.mrb[0].mxu0 %v2010
  %v2100 = vpop.f32.mrb[0].mxu0
  %v2101 = vadd.f32 0.0, %v2100
  %v2102 = vpop.f32.mrb[0].mxu0
  %v2103 = vpop.f32.mrb[0].mxu0
  %v2104 = vadd.f32 0.0, %v2103
  %v2105 = vpop.f32.mrb[0].mxu0
  %2106 = vmatprep.mubr.bf16.mxu0 0
  %2107 = vmatmul.mubr.bf16.gmra.mrb[0].mxu0 %v2013
  %v2108 = vpop.f32.mrb[0].mxu0
  %v2109 = vadd.f32 0.0, %v2108
  %v2110 = vpop.f32.mrb[0].mxu0
  %v2111 = vpop.f32.mrb[0].mxu0
  %v2112 = vadd.f32 0.0, %v2111
  %v2113 = vpop.f32.mrb[0].mxu0
  %2114 = vdwg.mxu0
  %v2115 = vadd.f32 %v1949, %v2053
  %v2116 = vadd.f32 %v1950, %v2056
  %v2117 = vadd.f32 %v1951, %v2061
  %v2118 = vadd.f32 %v1952, %v2064
  %v2119 = vadd.f32 %v1953, %v2069
  %v2120 = vadd.f32 %v1954, %v2072
  %v2121 = vadd.f32 %v1955, %v2077
  %v2122 = vadd.f32 %v1956, %v2080
  %v2123 = vadd.f32 %v1957, %v2085
  %v2124 = vadd.f32 %v1958, %v2088
  %v2125 = vadd.f32 %v1959, %v2093
  %v2126 = vadd.f32 %v1960, %v2096
  %v2127 = vadd.f32 %v1961, %v2101
  %v2128 = vadd.f32 %v1962, %v2104
  %v2129 = vadd.f32 %v1963, %v2109
  %v2130 = vadd.f32 %v1964, %v2112
  %v2131 = vld [vmem:[%s5] sm:$0x1]
  %v2132 = vld [vmem:[%s6] sm:$0x1]
  %v2133 = vsel %vm419, %v2115, 0.0
  %v2134 = vsel %vm419, %v2116, 0.0
  %v2135 = vadd.f32 %v2133, %v2134
  %v2136 = vsel %vm419, %v2117, 0.0
  %v2137 = vadd.f32 %v2135, %v2136
  %v2138 = vsel %vm419, %v2118, 0.0
  %v2139 = vadd.f32 %v2137, %v2138
  %v2140 = vsel %vm419, %v2119, 0.0
  %v2141 = vadd.f32 %v2139, %v2140
  %v2142 = vsel %vm419, %v2120, 0.0
  %v2143 = vadd.f32 %v2141, %v2142
  %v2144 = vsel %vm419, %v2121, 0.0
  %v2145 = vadd.f32 %v2143, %v2144
  %v2146 = vsel %vm419, %v2122, 0.0
  %v2147 = vadd.f32 %v2145, %v2146
  %v2148 = vsel %vm419, %v2123, 0.0
  %v2149 = vadd.f32 %v2147, %v2148
  %v2150 = vsel %vm419, %v2124, 0.0
  %v2151 = vadd.f32 %v2149, %v2150
  %v2152 = vsel %vm419, %v2125, 0.0
  %v2153 = vadd.f32 %v2151, %v2152
  %v2154 = vsel %vm419, %v2126, 0.0
  %v2155 = vadd.f32 %v2153, %v2154
  %v2156 = vsel %vm419, %v2127, 0.0
  %v2157 = vadd.f32 %v2155, %v2156
  %v2158 = vsel %vm419, %v2128, 0.0
  %v2159 = vadd.f32 %v2157, %v2158
  %v2160 = vsel %vm419, %v2129, 0.0
  %v2161 = vadd.f32 %v2159, %v2160
  %v2162 = vsel %vm419, %v2130, 0.0
  %v2163 = vadd.f32 %v2161, %v2162
  %v2164 = vrot.slane %v2163, 4
  %v2165 = vadd.f32 %v2163, %v2164
  %v2166 = vrot.slane %v2165, 2
  %v2167 = vadd.f32 %v2165, %v2166
  %v2168 = vrot.slane %v2167, 1
  %v2169 = vadd.f32 %v2167, %v2168
  %v2170 = vmul.f32 %v2169, %v457
  %v2171 = vmul.f32 %v2115, %v2115
  %v2172 = vmul.f32 %v2116, %v2116
  %v2173 = vmul.f32 %v2117, %v2117
  %v2174 = vmul.f32 %v2118, %v2118
  %v2175 = vmul.f32 %v2119, %v2119
  %v2176 = vmul.f32 %v2120, %v2120
  %v2177 = vmul.f32 %v2121, %v2121
  %v2178 = vmul.f32 %v2122, %v2122
  %v2179 = vmul.f32 %v2123, %v2123
  %v2180 = vmul.f32 %v2124, %v2124
  %v2181 = vmul.f32 %v2125, %v2125
  %v2182 = vmul.f32 %v2126, %v2126
  %v2183 = vmul.f32 %v2127, %v2127
  %v2184 = vmul.f32 %v2128, %v2128
  %v2185 = vmul.f32 %v2129, %v2129
  %v2186 = vmul.f32 %v2130, %v2130
  %v2187 = vsel %vm419, %v2171, 0.0
  %v2188 = vsel %vm419, %v2172, 0.0
  %v2189 = vadd.f32 %v2187, %v2188
  %v2190 = vsel %vm419, %v2173, 0.0
  %v2191 = vadd.f32 %v2189, %v2190
  %v2192 = vsel %vm419, %v2174, 0.0
  %v2193 = vadd.f32 %v2191, %v2192
  %v2194 = vsel %vm419, %v2175, 0.0
  %v2195 = vadd.f32 %v2193, %v2194
  %v2196 = vsel %vm419, %v2176, 0.0
  %v2197 = vadd.f32 %v2195, %v2196
  %v2198 = vsel %vm419, %v2177, 0.0
  %v2199 = vadd.f32 %v2197, %v2198
  %v2200 = vsel %vm419, %v2178, 0.0
  %v2201 = vadd.f32 %v2199, %v2200
  %v2202 = vsel %vm419, %v2179, 0.0
  %v2203 = vadd.f32 %v2201, %v2202
  %v2204 = vsel %vm419, %v2180, 0.0
  %v2205 = vadd.f32 %v2203, %v2204
  %v2206 = vsel %vm419, %v2181, 0.0
  %v2207 = vadd.f32 %v2205, %v2206
  %v2208 = vsel %vm419, %v2182, 0.0
  %v2209 = vadd.f32 %v2207, %v2208
  %v2210 = vsel %vm419, %v2183, 0.0
  %v2211 = vadd.f32 %v2209, %v2210
  %v2212 = vsel %vm419, %v2184, 0.0
  %v2213 = vadd.f32 %v2211, %v2212
  %v2214 = vsel %vm419, %v2185, 0.0
  %v2215 = vadd.f32 %v2213, %v2214
  %v2216 = vsel %vm419, %v2186, 0.0
  %v2217 = vadd.f32 %v2215, %v2216
  %v2218 = vrot.slane %v2217, 4
  %v2219 = vadd.f32 %v2217, %v2218
  %v2220 = vrot.slane %v2219, 2
  %v2221 = vadd.f32 %v2219, %v2220
  %v2222 = vrot.slane %v2221, 1
  %v2223 = vadd.f32 %v2221, %v2222
  %v2224 = vmul.f32 %v2223, %v457
  %v2225 = vmul.f32 %v2170, %v2170
  %v2226 = vsub.f32 %v2224, %v2225
  %v2227 = vmax.f32 %v2226, 0.0
  %v2228 = vsub.f32 %v2115, %v2170
  %v2229 = vsub.f32 %v2116, %v2170
  %v2230 = vsub.f32 %v2117, %v2170
  %v2231 = vsub.f32 %v2118, %v2170
  %v2232 = vsub.f32 %v2119, %v2170
  %v2233 = vsub.f32 %v2120, %v2170
  %v2234 = vsub.f32 %v2121, %v2170
  %v2235 = vsub.f32 %v2122, %v2170
  %v2236 = vsub.f32 %v2123, %v2170
  %v2237 = vsub.f32 %v2124, %v2170
  %v2238 = vsub.f32 %v2125, %v2170
  %v2239 = vsub.f32 %v2126, %v2170
  %v2240 = vsub.f32 %v2127, %v2170
  %v2241 = vsub.f32 %v2128, %v2170
  %v2242 = vsub.f32 %v2129, %v2170
  %v2243 = vsub.f32 %v2130, %v2170
  %v2244 = vadd.f32 %v2227, 1e-05
  %v2245 = vrsqrt.pop %v2244
  %v2246 = vmul.f32 %v2228, %v2245
  %v2247 = vmul.f32 %v2229, %v2245
  %v2248 = vmul.f32 %v2230, %v2245
  %v2249 = vmul.f32 %v2231, %v2245
  %v2250 = vmul.f32 %v2232, %v2245
  %v2251 = vmul.f32 %v2233, %v2245
  %v2252 = vmul.f32 %v2234, %v2245
  %v2253 = vmul.f32 %v2235, %v2245
  %v2254 = vmul.f32 %v2236, %v2245
  %v2255 = vmul.f32 %v2237, %v2245
  %v2256 = vmul.f32 %v2238, %v2245
  %v2257 = vmul.f32 %v2239, %v2245
  %v2258 = vmul.f32 %v2240, %v2245
  %v2259 = vmul.f32 %v2241, %v2245
  %v2260 = vmul.f32 %v2242, %v2245
  %v2261 = vmul.f32 %v2243, %v2245
  %v2263 = vlaneseq
  %v2264 = vshrl.u32 %v2263, 7
  %v2265 = vsub.s32 0, %v2264
  %v2266 = vrot.slane %v2131, %v2265
  %v2268 = vmul.f32 %v2246, %v2266
  %v2269 = vmul.f32 %v2247, %v2266
  %v2270 = vmul.f32 %v2248, %v2266
  %v2271 = vmul.f32 %v2249, %v2266
  %v2272 = vmul.f32 %v2250, %v2266
  %v2273 = vmul.f32 %v2251, %v2266
  %v2274 = vmul.f32 %v2252, %v2266
  %v2275 = vmul.f32 %v2253, %v2266
  %v2276 = vmul.f32 %v2254, %v2266
  %v2277 = vmul.f32 %v2255, %v2266
  %v2278 = vmul.f32 %v2256, %v2266
  %v2279 = vmul.f32 %v2257, %v2266
  %v2280 = vmul.f32 %v2258, %v2266
  %v2281 = vmul.f32 %v2259, %v2266
  %v2282 = vmul.f32 %v2260, %v2266
  %v2283 = vmul.f32 %v2261, %v2266
  %v2285 = vlaneseq
  %v2286 = vshrl.u32 %v2285, 7
  %v2287 = vsub.s32 0, %v2286
  %v2288 = vrot.slane %v2132, %v2287
  %v2290 = vadd.f32 %v2268, %v2288
  %v2291 = vadd.f32 %v2269, %v2288
  %v2292 = vadd.f32 %v2270, %v2288
  %v2293 = vadd.f32 %v2271, %v2288
  %v2294 = vadd.f32 %v2272, %v2288
  %v2295 = vadd.f32 %v2273, %v2288
  %v2296 = vadd.f32 %v2274, %v2288
  %v2297 = vadd.f32 %v2275, %v2288
  %v2298 = vadd.f32 %v2276, %v2288
  %v2299 = vadd.f32 %v2277, %v2288
  %v2300 = vadd.f32 %v2278, %v2288
  %v2301 = vadd.f32 %v2279, %v2288
  %v2302 = vadd.f32 %v2280, %v2288
  %v2303 = vadd.f32 %v2281, %v2288
  %v2304 = vadd.f32 %v2282, %v2288
  %v2305 = vadd.f32 %v2283, %v2288
  %v2306 = vadd.f32 %v2290, %v154
  %v2307 = vadd.f32 %v2291, %v157
  %v2308 = vadd.f32 %v2292, %v162
  %v2309 = vadd.f32 %v2293, %v165
  %v2310 = vadd.f32 %v2294, %v170
  %v2311 = vadd.f32 %v2295, %v173
  %v2312 = vadd.f32 %v2296, %v178
  %v2313 = vadd.f32 %v2297, %v181
  %v2314 = vadd.f32 %v2298, %v186
  %v2315 = vadd.f32 %v2299, %v189
  %v2316 = vadd.f32 %v2300, %v194
  %v2317 = vadd.f32 %v2301, %v197
  %v2318 = vadd.f32 %v2302, %v202
  %v2319 = vadd.f32 %v2303, %v205
  %v2320 = vadd.f32 %v2304, %v210
  %v2321 = vadd.f32 %v2305, %v213
  %v2322 = vmax.f32 %v2306, 0.0
  %v2323 = vmax.f32 %v2307, 0.0
  %v2324 = vmax.f32 %v2308, 0.0
  %v2325 = vmax.f32 %v2309, 0.0
  %v2326 = vmax.f32 %v2310, 0.0
  %v2327 = vmax.f32 %v2311, 0.0
  %v2328 = vmax.f32 %v2312, 0.0
  %v2329 = vmax.f32 %v2313, 0.0
  %v2330 = vmax.f32 %v2314, 0.0
  %v2331 = vmax.f32 %v2315, 0.0
  %v2332 = vmax.f32 %v2316, 0.0
  %v2333 = vmax.f32 %v2317, 0.0
  %v2334 = vmax.f32 %v2318, 0.0
  %v2335 = vmax.f32 %v2319, 0.0
  %v2336 = vmax.f32 %v2320, 0.0
  %v2337 = vmax.f32 %v2321, 0.0
  %2338 = vst.msk [vmem:[%s9] sm:$0xff] %vm419, %v2322
  %2339 = vst.msk [vmem:[%s9 + $0x8] sm:$0xff] %vm419, %v2323
  %2340 = vst.msk [vmem:[%s9 + $0x10] sm:$0xff] %vm419, %v2324
  %2341 = vst.msk [vmem:[%s9 + $0x18] sm:$0xff] %vm419, %v2325
  %2342 = vst.msk [vmem:[%s9 + $0x20] sm:$0xff] %vm419, %v2326
  %2343 = vst.msk [vmem:[%s9 + $0x28] sm:$0xff] %vm419, %v2327
  %2344 = vst.msk [vmem:[%s9 + $0x30] sm:$0xff] %vm419, %v2328
  %2345 = vst.msk [vmem:[%s9 + $0x38] sm:$0xff] %vm419, %v2329
  %2346 = vst.msk [vmem:[%s9 + $0x40] sm:$0xff] %vm419, %v2330
  %2347 = vst.msk [vmem:[%s9 + $0x48] sm:$0xff] %vm419, %v2331
  %2348 = vst.msk [vmem:[%s9 + $0x50] sm:$0xff] %vm419, %v2332
  %2349 = vst.msk [vmem:[%s9 + $0x58] sm:$0xff] %vm419, %v2333
  %2350 = vst.msk [vmem:[%s9 + $0x60] sm:$0xff] %vm419, %v2334
  %2351 = vst.msk [vmem:[%s9 + $0x68] sm:$0xff] %vm419, %v2335
  %2352 = vst.msk [vmem:[%s9 + $0x70] sm:$0xff] %vm419, %v2336
  %2353 = vst.msk [vmem:[%s9 + $0x78] sm:$0xff] %vm419, %v2337
  // Predicated region
  $region38: #{tpu_custom_call.1} parent=0 // pred_check
    _
  $region39: #{tpu_custom_call.1} parent=0 // pred_check_branch
    %2355 = sbr.rel (0) target = $region41
  $region40: #{tpu_custom_call.1} parent=0 // pred_region
    _
  $region41: #{tpu_custom_call.1} parent=0 // pred_fallthru
    _
  // Predicated region
  $region42: #{tpu_custom_call.1} parent=0 // pred_check
    _
  $region43: #{tpu_custom_call.1} parent=0 // pred_check_branch
    %2357 = sbr.rel (0) target = $region45
  $region44: #{tpu_custom_call.1} parent=0 // pred_region
    _
  $region45: #{tpu_custom_call.1} parent=0 // pred_fallthru
    _

</llo_original>
